<compile_context>
chip_gen: v5e
topology: v5e:2x2
jax: 0.10.0
libtpu: 0.0.40
codegen_flags: <defaults>
</compile_context>

<pallas_src>
import functools

import jax
import jax.numpy as jnp
from jax import lax
from jax.experimental import pallas as pl
from jax.experimental.pallas import tpu as pltpu


def _round_up(x, m):
    return (x + m - 1) // m * m


def _lstm_chunk_kernel(x_ref, w_ih_ref, w_hh_ref, b_ref,
                       h_out_ref,
                       xproj_sc, h_sc, c_sc,
                       *, Tc, seq_len, padded_len, H_pad, unroll):
    """One (batch-tile, time-chunk) grid step of the LSTM recurrence.

    x_ref     : (Tc, TB, E)          time-major input chunk, E unpadded
    w_ih_ref  : (E, 4*H_pad)         input weights, gates lane-aligned
    w_hh_ref  : (H_pad, 4*H_pad)     recurrent weights, gates lane-aligned
    b_ref     : (1, 4*H_pad)         combined bias (b_ih + b_hh), gate-padded
    h_out_ref : (TB, H_pad)          final hidden state (lane-dense output)
    xproj_sc  : (Tc, TB, 4*H_pad)    chunk-level X @ W_ih + b
    h_sc/c_sc : (TB, H_pad)          recurrent state, resident across time axis
    """
    tci = pl.program_id(1)                 # time-chunk index (sequential)
    last = pl.num_programs(1) - 1
    TB = h_sc.shape[0]
    E = x_ref.shape[-1]

    @pl.when(tci == 0)
    def _():
        h_sc[...] = jnp.zeros_like(h_sc)
        c_sc[...] = jnp.zeros_like(c_sc)

    # ---- chunk-level input projection (dependence-free, full MXU utilization) ----
    # One (Tc*TB, E) x (E, 4*H_pad) matmul; bias folded in once per element here so
    # the serial per-step chain has no broadcast/add for it.
    x2d = x_ref[...].reshape(Tc * TB, E)
    xproj = jnp.dot(x2d, w_ih_ref[...], preferred_element_type=jnp.float32)
    xproj = xproj + b_ref[...]                                  # (1, 4*H_pad) broadcast
    xproj_sc[...] = xproj.reshape(Tc, TB, 4 * H_pad)

    w_hh = w_hh_ref[...]                                        # resident recurrent weights

    def make_step(masked):
        def step(s, carry):
            h, c = carry
            # Serial-critical matmul: K = H_pad only (input half hoisted above).
            gates = xproj_sc[s] + jnp.dot(h, w_hh,
                                          preferred_element_type=jnp.float32)
            # PyTorch LSTM gate order i, f, g, o; each slab is 128-lane aligned so
            # these slices are free static views.  jax.nn.sigmoid lowers to the
            # single-tanh form (one EUP op per gate).
            i_g = jax.nn.sigmoid(gates[:, 0 * H_pad:1 * H_pad])
            f_g = jax.nn.sigmoid(gates[:, 1 * H_pad:2 * H_pad])
            g_g = jnp.tanh(gates[:, 2 * H_pad:3 * H_pad])
            o_g = jax.nn.sigmoid(gates[:, 3 * H_pad:4 * H_pad])
            c_new = f_g * c + i_g * g_g
            h_new = o_g * jnp.tanh(c_new)
            if masked:  # only emitted for the tail chunk
                valid = (tci * Tc + s) < seq_len
                h_new = jnp.where(valid, h_new, h)
                c_new = jnp.where(valid, c_new, c)
            return h_new, c_new
        return step

    def run_chunk(masked):
        h, c = lax.fori_loop(0, Tc, make_step(masked),
                             (h_sc[...], c_sc[...]), unroll=unroll)
        h_sc[...] = h
        c_sc[...] = c

    if padded_len != seq_len:
        # Only the last time-chunk can contain padded steps; keep the two full-tile
        # selects out of the hot loop of every full chunk.
        @pl.when(tci != last)
        def _():
            run_chunk(False)

        @pl.when(tci == last)
        def _():
            run_chunk(True)
    else:
        run_chunk(False)

    @pl.when(tci == last)
    def _():
        h_out_ref[...] = h_sc[...].astype(h_out_ref.dtype)


def lstm_emotion_classifier(tokens, params, *, time_chunk=32, batch_tile=None,
                            unroll=8):
    """tokens: (B, T) int32.  Returns logits (B, num_classes) float32."""
    emb = params["embedding"]            # (V, E)
    w_ih_t = params["w_ih_t"]            # (E, 4H)
    w_hh_t = params["w_hh_t"]            # (H, 4H)
    bias = params["bias"]                # (1, 4H)  (= b_ih + b_hh)
    fc_w_t = params["fc_w_t"]            # (H, C)
    fc_b = params["fc_b"]                # (1, C)

    B, T = tokens.shape
    E = emb.shape[1]
    H = w_hh_t.shape[0]

    # ---- padded / fused layouts -------------------------------------------------
    H_pad = _round_up(H, 128)            # each gate gets a lane-aligned 128-mult slab
    B_pad = _round_up(B, 8)              # sublane multiple
    if batch_tile is None:
        # TODO(synk): on v7x pick batch_tile ~= round_up(B_pad/2, 8) when
        # B_pad <= 256 so NB >= 2 and the "parallel" axis engages both TensorCores.
        batch_tile = min(B_pad, 128)
    TB = _round_up(min(batch_tile, B_pad), 8)
    B_pad = _round_up(B_pad, TB)
    NB = B_pad // TB
    Tc = min(time_chunk, T)              # timesteps per grid step
    NT = pl.cdiv(T, Tc)
    T_pad = NT * Tc
    unroll = max(1, min(unroll, Tc))

    def pad_gates(w, rows_pad):
        # Gate g's H real columns sit at lane offset g*H_pad; padded cols/bias are
        # zero so padded h/c lanes stay exactly 0 through the recurrence.
        out = jnp.zeros((rows_pad, 4 * H_pad), w.dtype)
        for g in range(4):
            out = out.at[:w.shape[0], g * H_pad:g * H_pad + H].set(
                w[:, g * H:(g + 1) * H])
        return out

    w_ih_p = pad_gates(w_ih_t, E)        # (E, 4*H_pad)  -- rows (E) left unpadded
    w_hh_p = pad_gates(w_hh_t, H_pad)    # (H_pad, 4*H_pad)
    bias_p = pad_gates(bias, 1)          # (1, 4*H_pad)

    tok_p = jnp.pad(tokens, ((0, B_pad - B), (0, T_pad - T)))    # pad with <PAD>=0
    # Time-major gather at the real E (no zero-padding shipped over HBM).
    x = jnp.take(emb, tok_p.T, axis=0)                           # (T_pad, B_pad, E)

    kernel = functools.partial(_lstm_chunk_kernel, Tc=Tc, seq_len=T,
                               padded_len=T_pad, H_pad=H_pad, unroll=unroll)

    h_last = pl.pallas_call(
        kernel,
        out_shape=jax.ShapeDtypeStruct((B_pad, H_pad), jnp.float32),
        grid=(NB, NT),
        in_specs=[
            pl.BlockSpec((Tc, TB, E), lambda b, t: (t, b, 0)),          # x chunk (unpadded E)
            pl.BlockSpec((E, 4 * H_pad), lambda b, t: (0, 0)),          # W_ih (resident)
            pl.BlockSpec((H_pad, 4 * H_pad), lambda b, t: (0, 0)),      # W_hh (resident)
            pl.BlockSpec((1, 4 * H_pad), lambda b, t: (0, 0)),          # bias (resident)
        ],
        out_specs=pl.BlockSpec((TB, H_pad), lambda b, t: (b, 0)),       # constant along time axis
        scratch_shapes=[
            pltpu.VMEM((Tc, TB, 4 * H_pad), jnp.float32),   # chunk input projection
            pltpu.VMEM((TB, H_pad), jnp.float32),           # h
            pltpu.VMEM((TB, H_pad), jnp.float32),           # c
        ],
        compiler_params=pltpu.CompilerParams(
            dimension_semantics=("parallel", "arbitrary"),
            vmem_limit_bytes=48 * 1024 * 1024),              # v7x-safe (64 MiB/TC physical)
    )(x, w_ih_p, w_hh_p, bias_p)

    # Tiny FC head (C=4 is lane-sparse) applied outside the kernel on the last hidden state.
    return h_last[:B, :H] @ fc_w_t + fc_b


def make_params(key, vocab_size, embed_dim, hidden_dim, num_classes):
    ks = jax.random.split(key, 7)
    scale = 0.1
    embedding = scale * jax.random.normal(ks[0], (vocab_size, embed_dim), jnp.float32)
    # padding_idx = 0 ('<PAD>') -> zero row, matching nn.Embedding(padding_idx=0)
    embedding = embedding.at[0].set(0.0)
    w_ih = scale * jax.random.normal(ks[1], (4 * hidden_dim, embed_dim), jnp.float32)
    w_hh = scale * jax.random.normal(ks[2], (4 * hidden_dim, hidden_dim), jnp.float32)
    b_ih = scale * jax.random.normal(ks[3], (4 * hidden_dim,), jnp.float32)
    b_hh = scale * jax.random.normal(ks[4], (4 * hidden_dim,), jnp.float32)
    fc_w = scale * jax.random.normal(ks[5], (num_classes, hidden_dim), jnp.float32)
    fc_b = scale * jax.random.normal(ks[6], (num_classes,), jnp.float32)
    return {
        "embedding": embedding,
        "w_ih_t": w_ih.T,                       # (E, 4H)
        "w_hh_t": w_hh.T,                       # (H, 4H)
        "bias": (b_ih + b_hh)[None, :],         # (1, 4H)
        "fc_w_t": fc_w.T,                       # (H, C)
        "fc_b": fc_b[None, :],                  # (1, C)
    }


def _reference(tokens, params):
    """Pure-JAX reference of the PyTorch forward, for a sanity check."""
    x = jnp.take(params["embedding"], tokens, axis=0)   # (B, T, E)
    B, T, E = x.shape
    H = params["w_hh_t"].shape[0]
    h = jnp.zeros((B, H), jnp.float32)
    c = jnp.zeros((B, H), jnp.float32)
    for t in range(T):
        gates = x[:, t] @ params["w_ih_t"] + h @ params["w_hh_t"] + params["bias"]
        i = jax.nn.sigmoid(gates[:, 0 * H:1 * H])
        f = jax.nn.sigmoid(gates[:, 1 * H:2 * H])
        g = jnp.tanh(gates[:, 2 * H:3 * H])
        o = jax.nn.sigmoid(gates[:, 3 * H:4 * H])
        c = f * c + i * g
        h = o * jnp.tanh(c)
    return h @ params["fc_w_t"] + params["fc_b"]


if __name__ == "__main__":
    vocab_size, embed_dim, hidden_dim, num_classes = 10, 16, 32, 4
    B, T = 2, 8

    key = jax.random.PRNGKey(0)
    k_par, k_tok = jax.random.split(key)
    params = make_params(k_par, vocab_size, embed_dim, hidden_dim, num_classes)
    tokens = jax.random.randint(k_tok, (B, T), 0, vocab_size, dtype=jnp.int32)

    logits = lstm_emotion_classifier(tokens, params)
    logits = jax.block_until_ready(logits)

    ref = _reference(tokens, params)
    assert logits.shape == (B, num_classes)
    assert jnp.allclose(logits, ref, atol=1e-5, rtol=1e-5)

    print("KERNEL_OK")
</pallas_src>

<mosaic_0001>
module attributes {stable_mosaic.version = 11 : i64} {
  func.func @_lstm_chunk_kernel(%arg0: i32, %arg1: i32, %arg2: memref<8x8x16xf32, #tpu.memory_space<vmem>>, %arg3: memref<16x512xf32, #tpu.memory_space<vmem>>, %arg4: memref<128x512xf32, #tpu.memory_space<vmem>>, %arg5: memref<1x512xf32, #tpu.memory_space<vmem>>, %arg6: memref<8x128xf32, #tpu.memory_space<vmem>>, %arg7: memref<8x8x512xf32, #tpu.memory_space<vmem>>, %arg8: memref<8x128xf32, #tpu.memory_space<vmem>>, %arg9: memref<8x128xf32, #tpu.memory_space<vmem>>) attributes {dimension_semantics = [#tpu.dimension_semantics<parallel>, #tpu.dimension_semantics<arbitrary>], iteration_bounds = array<i64: 1, 1>, scalar_prefetch = 0 : i64, scratch_operands = 3 : i64, tpu.core_type = #tpu.core_type<tc>, window_params = [{transform_indices = @transform_0, window_bounds = array<i64: 8, 8, 16>}, {pipeline_mode = #tpu.pipeline_mode<synchronous>, transform_indices = @transform_1, window_bounds = array<i64: 16, 512>}, {pipeline_mode = #tpu.pipeline_mode<synchronous>, transform_indices = @transform_2, window_bounds = array<i64: 128, 512>}, {pipeline_mode = #tpu.pipeline_mode<synchronous>, transform_indices = @transform_3, window_bounds = array<i64: 1, 512>}, {transform_indices = @transform_4, window_bounds = array<i64: 8, 128>}]} {
    %c0_i32 = arith.constant 0 : i32
    %0 = arith.cmpi eq, %arg1, %c0_i32 : i32
    %1 = arith.extui %0 : i1 to i32
    %c0_i32_0 = arith.constant 0 : i32
    %2 = arith.cmpi ne, %1, %c0_i32_0 : i32
    scf.if %2 {
      %cst_71 = arith.constant 0.000000e+00 : f32
      %260 = vector.broadcast %cst_71 : f32 to vector<8x128xf32>
      %c0_72 = arith.constant 0 : index
      %c0_73 = arith.constant 0 : index
      %261 = vector.load %arg8[%c0_72, %c0_73] : memref<8x128xf32, #tpu.memory_space<vmem>>, vector<8x128xf32>
      tpu.vector_store %arg8[%c0_72, %c0_73], %260 {strides = array<i32>} : memref<8x128xf32, #tpu.memory_space<vmem>>, vector<8x128xf32>,
      %cst_74 = arith.constant 0.000000e+00 : f32
      %262 = vector.broadcast %cst_74 : f32 to vector<8x128xf32>
      %c0_75 = arith.constant 0 : index
      %c0_76 = arith.constant 0 : index
      %263 = vector.load %arg9[%c0_75, %c0_76] : memref<8x128xf32, #tpu.memory_space<vmem>>, vector<8x128xf32>
      tpu.vector_store %arg9[%c0_75, %c0_76], %262 {strides = array<i32>} : memref<8x128xf32, #tpu.memory_space<vmem>>, vector<8x128xf32>,
    } else {
    }
    %c0 = arith.constant 0 : index
    %c0_1 = arith.constant 0 : index
    %c0_2 = arith.constant 0 : index
    %3 = vector.load %arg2[%c0, %c0_1, %c0_2] : memref<8x8x16xf32, #tpu.memory_space<vmem>>, vector<8x8x16xf32>
    %4 = vector.shape_cast %3 : vector<8x8x16xf32> to vector<64x16xf32>
    %c0_3 = arith.constant 0 : index
    %c0_4 = arith.constant 0 : index
    %5 = vector.load %arg3[%c0_3, %c0_4] : memref<16x512xf32, #tpu.memory_space<vmem>>, vector<16x512xf32>
    %cst = arith.constant dense<0.000000e+00> : vector<64x512xf32>
    %6 = tpu.matmul %4, %5, %cst {dimension_numbers = #tpu.dot_dimension_numbers<[1], [0], [0], [1], [0, 0, 1, 1], [], []>} : vector<64x16xf32>, vector<16x512xf32>, vector<64x512xf32> -> vector<64x512xf32>
    %c0_5 = arith.constant 0 : index
    %c0_6 = arith.constant 0 : index
    %7 = vector.load %arg5[%c0_5, %c0_6] : memref<1x512xf32, #tpu.memory_space<vmem>>, vector<1x512xf32>
    %8 = vector.broadcast %7 : vector<1x512xf32> to vector<64x512xf32>
    %9 = arith.addf %6, %8 : vector<64x512xf32>
    %10 = vector.shape_cast %9 : vector<64x512xf32> to vector<8x8x512xf32>
    %c0_7 = arith.constant 0 : index
    %c0_8 = arith.constant 0 : index
    %c0_9 = arith.constant 0 : index
    %11 = vector.load %arg7[%c0_7, %c0_8, %c0_9] : memref<8x8x512xf32, #tpu.memory_space<vmem>>, vector<8x8x512xf32>
    tpu.vector_store %arg7[%c0_7, %c0_8, %c0_9], %10 {strides = array<i32>} : memref<8x8x512xf32, #tpu.memory_space<vmem>>, vector<8x8x512xf32>,
    %c0_10 = arith.constant 0 : index
    %c0_11 = arith.constant 0 : index
    %12 = vector.load %arg4[%c0_10, %c0_11] : memref<128x512xf32, #tpu.memory_space<vmem>>, vector<128x512xf32>
    %c0_12 = arith.constant 0 : index
    %c0_13 = arith.constant 0 : index
    %13 = vector.load %arg8[%c0_12, %c0_13] : memref<8x128xf32, #tpu.memory_space<vmem>>, vector<8x128xf32>
    %c0_14 = arith.constant 0 : index
    %c0_15 = arith.constant 0 : index
    %14 = vector.load %arg9[%c0_14, %c0_15] : memref<8x128xf32, #tpu.memory_space<vmem>>, vector<8x128xf32>
    %c0_i32_16 = arith.constant 0 : i32
    %15 = arith.index_cast %c0_i32_16 : i32 to index
    %c0_17 = arith.constant 0 : index
    %c0_18 = arith.constant 0 : index
    %16 = vector.load %arg7[%15, %c0_17, %c0_18] : memref<8x8x512xf32, #tpu.memory_space<vmem>>, vector<1x8x512xf32>
    %17 = vector.shape_cast %16 : vector<1x8x512xf32> to vector<8x512xf32>
    %cst_19 = arith.constant dense<0.000000e+00> : vector<8x512xf32>
    %18 = tpu.matmul %13, %12, %cst_19 {dimension_numbers = #tpu.dot_dimension_numbers<[1], [0], [0], [1], [0, 0, 1, 1], [], []>} : vector<8x128xf32>, vector<128x512xf32>, vector<8x512xf32> -> vector<8x512xf32>
    %19 = arith.addf %17, %18 : vector<8x512xf32>
    %20 = vector.extract_strided_slice %19 {offsets = [0, 0], sizes = [8, 128], strides = [1, 1]} : vector<8x512xf32> to vector<8x128xf32>
    %21 = arith.negf %20 : vector<8x128xf32>
    %22 = math.exp %21 : vector<8x128xf32>
    %cst_20 = arith.constant 1.000000e+00 : f32
    %23 = vector.broadcast %cst_20 : f32 to vector<8x128xf32>
    %24 = arith.addf %23, %22 : vector<8x128xf32>
    %25 = arith.divf %23, %24 : vector<8x128xf32>
    %26 = vector.extract_strided_slice %19 {offsets = [0, 128], sizes = [8, 128], strides = [1, 1]} : vector<8x512xf32> to vector<8x128xf32>
    %27 = arith.negf %26 : vector<8x128xf32>
    %28 = math.exp %27 : vector<8x128xf32>
    %cst_21 = arith.constant 1.000000e+00 : f32
    %29 = vector.broadcast %cst_21 : f32 to vector<8x128xf32>
    %30 = arith.addf %29, %28 : vector<8x128xf32>
    %31 = arith.divf %29, %30 : vector<8x128xf32>
    %32 = vector.extract_strided_slice %19 {offsets = [0, 256], sizes = [8, 128], strides = [1, 1]} : vector<8x512xf32> to vector<8x128xf32>
    %33 = math.tanh %32 : vector<8x128xf32>
    %34 = vector.extract_strided_slice %19 {offsets = [0, 384], sizes = [8, 128], strides = [1, 1]} : vector<8x512xf32> to vector<8x128xf32>
    %35 = arith.negf %34 : vector<8x128xf32>
    %36 = math.exp %35 : vector<8x128xf32>
    %cst_22 = arith.constant 1.000000e+00 : f32
    %37 = vector.broadcast %cst_22 : f32 to vector<8x128xf32>
    %38 = arith.addf %37, %36 : vector<8x128xf32>
    %39 = arith.divf %37, %38 : vector<8x128xf32>
    %40 = arith.mulf %31, %14 : vector<8x128xf32>
    %41 = arith.mulf %25, %33 : vector<8x128xf32>
    %42 = arith.addf %40, %41 : vector<8x128xf32>
    %43 = math.tanh %42 : vector<8x128xf32>
    %44 = arith.mulf %39, %43 : vector<8x128xf32>
    %c1_i32 = arith.constant 1 : i32
    %45 = arith.index_cast %c1_i32 : i32 to index
    %c0_23 = arith.constant 0 : index
    %c0_24 = arith.constant 0 : index
    %46 = vector.load %arg7[%45, %c0_23, %c0_24] : memref<8x8x512xf32, #tpu.memory_space<vmem>>, vector<1x8x512xf32>
    %47 = vector.shape_cast %46 : vector<1x8x512xf32> to vector<8x512xf32>
    %cst_25 = arith.constant dense<0.000000e+00> : vector<8x512xf32>
    %48 = tpu.matmul %44, %12, %cst_25 {dimension_numbers = #tpu.dot_dimension_numbers<[1], [0], [0], [1], [0, 0, 1, 1], [], []>} : vector<8x128xf32>, vector<128x512xf32>, vector<8x512xf32> -> vector<8x512xf32>
    %49 = arith.addf %47, %48 : vector<8x512xf32>
    %50 = vector.extract_strided_slice %49 {offsets = [0, 0], sizes = [8, 128], strides = [1, 1]} : vector<8x512xf32> to vector<8x128xf32>
    %51 = arith.negf %50 : vector<8x128xf32>
    %52 = math.exp %51 : vector<8x128xf32>
    %cst_26 = arith.constant 1.000000e+00 : f32
    %53 = vector.broadcast %cst_26 : f32 to vector<8x128xf32>
    %54 = arith.addf %53, %52 : vector<8x128xf32>
    %55 = arith.divf %53, %54 : vector<8x128xf32>
    %56 = vector.extract_strided_slice %49 {offsets = [0, 128], sizes = [8, 128], strides = [1, 1]} : vector<8x512xf32> to vector<8x128xf32>
    %57 = arith.negf %56 : vector<8x128xf32>
    %58 = math.exp %57 : vector<8x128xf32>
    %cst_27 = arith.constant 1.000000e+00 : f32
    %59 = vector.broadcast %cst_27 : f32 to vector<8x128xf32>
    %60 = arith.addf %59, %58 : vector<8x128xf32>
    %61 = arith.divf %59, %60 : vector<8x128xf32>
    %62 = vector.extract_strided_slice %49 {offsets = [0, 256], sizes = [8, 128], strides = [1, 1]} : vector<8x512xf32> to vector<8x128xf32>
    %63 = math.tanh %62 : vector<8x128xf32>
    %64 = vector.extract_strided_slice %49 {offsets = [0, 384], sizes = [8, 128], strides = [1, 1]} : vector<8x512xf32> to vector<8x128xf32>
    %65 = arith.negf %64 : vector<8x128xf32>
    %66 = math.exp %65 : vector<8x128xf32>
    %cst_28 = arith.constant 1.000000e+00 : f32
    %67 = vector.broadcast %cst_28 : f32 to vector<8x128xf32>
    %68 = arith.addf %67, %66 : vector<8x128xf32>
    %69 = arith.divf %67, %68 : vector<8x128xf32>
    %70 = arith.mulf %61, %42 : vector<8x128xf32>
    %71 = arith.mulf %55, %63 : vector<8x128xf32>
    %72 = arith.addf %70, %71 : vector<8x128xf32>
    %73 = math.tanh %72 : vector<8x128xf32>
    %74 = arith.mulf %69, %73 : vector<8x128xf32>
    %c2_i32 = arith.constant 2 : i32
    %75 = arith.index_cast %c2_i32 : i32 to index
    %c0_29 = arith.constant 0 : index
    %c0_30 = arith.constant 0 : index
    %76 = vector.load %arg7[%75, %c0_29, %c0_30] : memref<8x8x512xf32, #tpu.memory_space<vmem>>, vector<1x8x512xf32>
    %77 = vector.shape_cast %76 : vector<1x8x512xf32> to vector<8x512xf32>
    %cst_31 = arith.constant dense<0.000000e+00> : vector<8x512xf32>
    %78 = tpu.matmul %74, %12, %cst_31 {dimension_numbers = #tpu.dot_dimension_numbers<[1], [0], [0], [1], [0, 0, 1, 1], [], []>} : vector<8x128xf32>, vector<128x512xf32>, vector<8x512xf32> -> vector<8x512xf32>
    %79 = arith.addf %77, %78 : vector<8x512xf32>
    %80 = vector.extract_strided_slice %79 {offsets = [0, 0], sizes = [8, 128], strides = [1, 1]} : vector<8x512xf32> to vector<8x128xf32>
    %81 = arith.negf %80 : vector<8x128xf32>
    %82 = math.exp %81 : vector<8x128xf32>
    %cst_32 = arith.constant 1.000000e+00 : f32
    %83 = vector.broadcast %cst_32 : f32 to vector<8x128xf32>
    %84 = arith.addf %83, %82 : vector<8x128xf32>
    %85 = arith.divf %83, %84 : vector<8x128xf32>
    %86 = vector.extract_strided_slice %79 {offsets = [0, 128], sizes = [8, 128], strides = [1, 1]} : vector<8x512xf32> to vector<8x128xf32>
    %87 = arith.negf %86 : vector<8x128xf32>
    %88 = math.exp %87 : vector<8x128xf32>
    %cst_33 = arith.constant 1.000000e+00 : f32
    %89 = vector.broadcast %cst_33 : f32 to vector<8x128xf32>
    %90 = arith.addf %89, %88 : vector<8x128xf32>
    %91 = arith.divf %89, %90 : vector<8x128xf32>
    %92 = vector.extract_strided_slice %79 {offsets = [0, 256], sizes = [8, 128], strides = [1, 1]} : vector<8x512xf32> to vector<8x128xf32>
    %93 = math.tanh %92 : vector<8x128xf32>
    %94 = vector.extract_strided_slice %79 {offsets = [0, 384], sizes = [8, 128], strides = [1, 1]} : vector<8x512xf32> to vector<8x128xf32>
    %95 = arith.negf %94 : vector<8x128xf32>
    %96 = math.exp %95 : vector<8x128xf32>
    %cst_34 = arith.constant 1.000000e+00 : f32
    %97 = vector.broadcast %cst_34 : f32 to vector<8x128xf32>
    %98 = arith.addf %97, %96 : vector<8x128xf32>
    %99 = arith.divf %97, %98 : vector<8x128xf32>
    %100 = arith.mulf %91, %72 : vector<8x128xf32>
    %101 = arith.mulf %85, %93 : vector<8x128xf32>
    %102 = arith.addf %100, %101 : vector<8x128xf32>
    %103 = math.tanh %102 : vector<8x128xf32>
    %104 = arith.mulf %99, %103 : vector<8x128xf32>
    %c3_i32 = arith.constant 3 : i32
    %105 = arith.index_cast %c3_i32 : i32 to index
    %c0_35 = arith.constant 0 : index
    %c0_36 = arith.constant 0 : index
    %106 = vector.load %arg7[%105, %c0_35, %c0_36] : memref<8x8x512xf32, #tpu.memory_space<vmem>>, vector<1x8x512xf32>
    %107 = vector.shape_cast %106 : vector<1x8x512xf32> to vector<8x512xf32>
    %cst_37 = arith.constant dense<0.000000e+00> : vector<8x512xf32>
    %108 = tpu.matmul %104, %12, %cst_37 {dimension_numbers = #tpu.dot_dimension_numbers<[1], [0], [0], [1], [0, 0, 1, 1], [], []>} : vector<8x128xf32>, vector<128x512xf32>, vector<8x512xf32> -> vector<8x512xf32>
    %109 = arith.addf %107, %108 : vector<8x512xf32>
    %110 = vector.extract_strided_slice %109 {offsets = [0, 0], sizes = [8, 128], strides = [1, 1]} : vector<8x512xf32> to vector<8x128xf32>
    %111 = arith.negf %110 : vector<8x128xf32>
    %112 = math.exp %111 : vector<8x128xf32>
    %cst_38 = arith.constant 1.000000e+00 : f32
    %113 = vector.broadcast %cst_38 : f32 to vector<8x128xf32>
    %114 = arith.addf %113, %112 : vector<8x128xf32>
    %115 = arith.divf %113, %114 : vector<8x128xf32>
    %116 = vector.extract_strided_slice %109 {offsets = [0, 128], sizes = [8, 128], strides = [1, 1]} : vector<8x512xf32> to vector<8x128xf32>
    %117 = arith.negf %116 : vector<8x128xf32>
    %118 = math.exp %117 : vector<8x128xf32>
    %cst_39 = arith.constant 1.000000e+00 : f32
    %119 = vector.broadcast %cst_39 : f32 to vector<8x128xf32>
    %120 = arith.addf %119, %118 : vector<8x128xf32>
    %121 = arith.divf %119, %120 : vector<8x128xf32>
    %122 = vector.extract_strided_slice %109 {offsets = [0, 256], sizes = [8, 128], strides = [1, 1]} : vector<8x512xf32> to vector<8x128xf32>
    %123 = math.tanh %122 : vector<8x128xf32>
    %124 = vector.extract_strided_slice %109 {offsets = [0, 384], sizes = [8, 128], strides = [1, 1]} : vector<8x512xf32> to vector<8x128xf32>
    %125 = arith.negf %124 : vector<8x128xf32>
    %126 = math.exp %125 : vector<8x128xf32>
    %cst_40 = arith.constant 1.000000e+00 : f32
    %127 = vector.broadcast %cst_40 : f32 to vector<8x128xf32>
    %128 = arith.addf %127, %126 : vector<8x128xf32>
    %129 = arith.divf %127, %128 : vector<8x128xf32>
    %130 = arith.mulf %121, %102 : vector<8x128xf32>
    %131 = arith.mulf %115, %123 : vector<8x128xf32>
    %132 = arith.addf %130, %131 : vector<8x128xf32>
    %133 = math.tanh %132 : vector<8x128xf32>
    %134 = arith.mulf %129, %133 : vector<8x128xf32>
    %c4_i32 = arith.constant 4 : i32
    %135 = arith.index_cast %c4_i32 : i32 to index
    %c0_41 = arith.constant 0 : index
    %c0_42 = arith.constant 0 : index
    %136 = vector.load %arg7[%135, %c0_41, %c0_42] : memref<8x8x512xf32, #tpu.memory_space<vmem>>, vector<1x8x512xf32>
    %137 = vector.shape_cast %136 : vector<1x8x512xf32> to vector<8x512xf32>
    %cst_43 = arith.constant dense<0.000000e+00> : vector<8x512xf32>
    %138 = tpu.matmul %134, %12, %cst_43 {dimension_numbers = #tpu.dot_dimension_numbers<[1], [0], [0], [1], [0, 0, 1, 1], [], []>} : vector<8x128xf32>, vector<128x512xf32>, vector<8x512xf32> -> vector<8x512xf32>
    %139 = arith.addf %137, %138 : vector<8x512xf32>
    %140 = vector.extract_strided_slice %139 {offsets = [0, 0], sizes = [8, 128], strides = [1, 1]} : vector<8x512xf32> to vector<8x128xf32>
    %141 = arith.negf %140 : vector<8x128xf32>
    %142 = math.exp %141 : vector<8x128xf32>
    %cst_44 = arith.constant 1.000000e+00 : f32
    %143 = vector.broadcast %cst_44 : f32 to vector<8x128xf32>
    %144 = arith.addf %143, %142 : vector<8x128xf32>
    %145 = arith.divf %143, %144 : vector<8x128xf32>
    %146 = vector.extract_strided_slice %139 {offsets = [0, 128], sizes = [8, 128], strides = [1, 1]} : vector<8x512xf32> to vector<8x128xf32>
    %147 = arith.negf %146 : vector<8x128xf32>
    %148 = math.exp %147 : vector<8x128xf32>
    %cst_45 = arith.constant 1.000000e+00 : f32
    %149 = vector.broadcast %cst_45 : f32 to vector<8x128xf32>
    %150 = arith.addf %149, %148 : vector<8x128xf32>
    %151 = arith.divf %149, %150 : vector<8x128xf32>
    %152 = vector.extract_strided_slice %139 {offsets = [0, 256], sizes = [8, 128], strides = [1, 1]} : vector<8x512xf32> to vector<8x128xf32>
    %153 = math.tanh %152 : vector<8x128xf32>
    %154 = vector.extract_strided_slice %139 {offsets = [0, 384], sizes = [8, 128], strides = [1, 1]} : vector<8x512xf32> to vector<8x128xf32>
    %155 = arith.negf %154 : vector<8x128xf32>
    %156 = math.exp %155 : vector<8x128xf32>
    %cst_46 = arith.constant 1.000000e+00 : f32
    %157 = vector.broadcast %cst_46 : f32 to vector<8x128xf32>
    %158 = arith.addf %157, %156 : vector<8x128xf32>
    %159 = arith.divf %157, %158 : vector<8x128xf32>
    %160 = arith.mulf %151, %132 : vector<8x128xf32>
    %161 = arith.mulf %145, %153 : vector<8x128xf32>
    %162 = arith.addf %160, %161 : vector<8x128xf32>
    %163 = math.tanh %162 : vector<8x128xf32>
    %164 = arith.mulf %159, %163 : vector<8x128xf32>
    %c5_i32 = arith.constant 5 : i32
    %165 = arith.index_cast %c5_i32 : i32 to index
    %c0_47 = arith.constant 0 : index
    %c0_48 = arith.constant 0 : index
    %166 = vector.load %arg7[%165, %c0_47, %c0_48] : memref<8x8x512xf32, #tpu.memory_space<vmem>>, vector<1x8x512xf32>
    %167 = vector.shape_cast %166 : vector<1x8x512xf32> to vector<8x512xf32>
    %cst_49 = arith.constant dense<0.000000e+00> : vector<8x512xf32>
    %168 = tpu.matmul %164, %12, %cst_49 {dimension_numbers = #tpu.dot_dimension_numbers<[1], [0], [0], [1], [0, 0, 1, 1], [], []>} : vector<8x128xf32>, vector<128x512xf32>, vector<8x512xf32> -> vector<8x512xf32>
    %169 = arith.addf %167, %168 : vector<8x512xf32>
    %170 = vector.extract_strided_slice %169 {offsets = [0, 0], sizes = [8, 128], strides = [1, 1]} : vector<8x512xf32> to vector<8x128xf32>
    %171 = arith.negf %170 : vector<8x128xf32>
    %172 = math.exp %171 : vector<8x128xf32>
    %cst_50 = arith.constant 1.000000e+00 : f32
    %173 = vector.broadcast %cst_50 : f32 to vector<8x128xf32>
    %174 = arith.addf %173, %172 : vector<8x128xf32>
    %175 = arith.divf %173, %174 : vector<8x128xf32>
    %176 = vector.extract_strided_slice %169 {offsets = [0, 128], sizes = [8, 128], strides = [1, 1]} : vector<8x512xf32> to vector<8x128xf32>
    %177 = arith.negf %176 : vector<8x128xf32>
    %178 = math.exp %177 : vector<8x128xf32>
    %cst_51 = arith.constant 1.000000e+00 : f32
    %179 = vector.broadcast %cst_51 : f32 to vector<8x128xf32>
    %180 = arith.addf %179, %178 : vector<8x128xf32>
    %181 = arith.divf %179, %180 : vector<8x128xf32>
    %182 = vector.extract_strided_slice %169 {offsets = [0, 256], sizes = [8, 128], strides = [1, 1]} : vector<8x512xf32> to vector<8x128xf32>
    %183 = math.tanh %182 : vector<8x128xf32>
    %184 = vector.extract_strided_slice %169 {offsets = [0, 384], sizes = [8, 128], strides = [1, 1]} : vector<8x512xf32> to vector<8x128xf32>
    %185 = arith.negf %184 : vector<8x128xf32>
    %186 = math.exp %185 : vector<8x128xf32>
    %cst_52 = arith.constant 1.000000e+00 : f32
    %187 = vector.broadcast %cst_52 : f32 to vector<8x128xf32>
    %188 = arith.addf %187, %186 : vector<8x128xf32>
    %189 = arith.divf %187, %188 : vector<8x128xf32>
    %190 = arith.mulf %181, %162 : vector<8x128xf32>
    %191 = arith.mulf %175, %183 : vector<8x128xf32>
    %192 = arith.addf %190, %191 : vector<8x128xf32>
    %193 = math.tanh %192 : vector<8x128xf32>
    %194 = arith.mulf %189, %193 : vector<8x128xf32>
    %c6_i32 = arith.constant 6 : i32
    %195 = arith.index_cast %c6_i32 : i32 to index
    %c0_53 = arith.constant 0 : index
    %c0_54 = arith.constant 0 : index
    %196 = vector.load %arg7[%195, %c0_53, %c0_54] : memref<8x8x512xf32, #tpu.memory_space<vmem>>, vector<1x8x512xf32>
    %197 = vector.shape_cast %196 : vector<1x8x512xf32> to vector<8x512xf32>
    %cst_55 = arith.constant dense<0.000000e+00> : vector<8x512xf32>
    %198 = tpu.matmul %194, %12, %cst_55 {dimension_numbers = #tpu.dot_dimension_numbers<[1], [0], [0], [1], [0, 0, 1, 1], [], []>} : vector<8x128xf32>, vector<128x512xf32>, vector<8x512xf32> -> vector<8x512xf32>
    %199 = arith.addf %197, %198 : vector<8x512xf32>
    %200 = vector.extract_strided_slice %199 {offsets = [0, 0], sizes = [8, 128], strides = [1, 1]} : vector<8x512xf32> to vector<8x128xf32>
    %201 = arith.negf %200 : vector<8x128xf32>
    %202 = math.exp %201 : vector<8x128xf32>
    %cst_56 = arith.constant 1.000000e+00 : f32
    %203 = vector.broadcast %cst_56 : f32 to vector<8x128xf32>
    %204 = arith.addf %203, %202 : vector<8x128xf32>
    %205 = arith.divf %203, %204 : vector<8x128xf32>
    %206 = vector.extract_strided_slice %199 {offsets = [0, 128], sizes = [8, 128], strides = [1, 1]} : vector<8x512xf32> to vector<8x128xf32>
    %207 = arith.negf %206 : vector<8x128xf32>
    %208 = math.exp %207 : vector<8x128xf32>
    %cst_57 = arith.constant 1.000000e+00 : f32
    %209 = vector.broadcast %cst_57 : f32 to vector<8x128xf32>
    %210 = arith.addf %209, %208 : vector<8x128xf32>
    %211 = arith.divf %209, %210 : vector<8x128xf32>
    %212 = vector.extract_strided_slice %199 {offsets = [0, 256], sizes = [8, 128], strides = [1, 1]} : vector<8x512xf32> to vector<8x128xf32>
    %213 = math.tanh %212 : vector<8x128xf32>
    %214 = vector.extract_strided_slice %199 {offsets = [0, 384], sizes = [8, 128], strides = [1, 1]} : vector<8x512xf32> to vector<8x128xf32>
    %215 = arith.negf %214 : vector<8x128xf32>
    %216 = math.exp %215 : vector<8x128xf32>
    %cst_58 = arith.constant 1.000000e+00 : f32
    %217 = vector.broadcast %cst_58 : f32 to vector<8x128xf32>
    %218 = arith.addf %217, %216 : vector<8x128xf32>
    %219 = arith.divf %217, %218 : vector<8x128xf32>
    %220 = arith.mulf %211, %192 : vector<8x128xf32>
    %221 = arith.mulf %205, %213 : vector<8x128xf32>
    %222 = arith.addf %220, %221 : vector<8x128xf32>
    %223 = math.tanh %222 : vector<8x128xf32>
    %224 = arith.mulf %219, %223 : vector<8x128xf32>
    %c7_i32 = arith.constant 7 : i32
    %225 = arith.index_cast %c7_i32 : i32 to index
    %c0_59 = arith.constant 0 : index
    %c0_60 = arith.constant 0 : index
    %226 = vector.load %arg7[%225, %c0_59, %c0_60] : memref<8x8x512xf32, #tpu.memory_space<vmem>>, vector<1x8x512xf32>
    %227 = vector.shape_cast %226 : vector<1x8x512xf32> to vector<8x512xf32>
    %cst_61 = arith.constant dense<0.000000e+00> : vector<8x512xf32>
    %228 = tpu.matmul %224, %12, %cst_61 {dimension_numbers = #tpu.dot_dimension_numbers<[1], [0], [0], [1], [0, 0, 1, 1], [], []>} : vector<8x128xf32>, vector<128x512xf32>, vector<8x512xf32> -> vector<8x512xf32>
    %229 = arith.addf %227, %228 : vector<8x512xf32>
    %230 = vector.extract_strided_slice %229 {offsets = [0, 0], sizes = [8, 128], strides = [1, 1]} : vector<8x512xf32> to vector<8x128xf32>
    %231 = arith.negf %230 : vector<8x128xf32>
    %232 = math.exp %231 : vector<8x128xf32>
    %cst_62 = arith.constant 1.000000e+00 : f32
    %233 = vector.broadcast %cst_62 : f32 to vector<8x128xf32>
    %234 = arith.addf %233, %232 : vector<8x128xf32>
    %235 = arith.divf %233, %234 : vector<8x128xf32>
    %236 = vector.extract_strided_slice %229 {offsets = [0, 128], sizes = [8, 128], strides = [1, 1]} : vector<8x512xf32> to vector<8x128xf32>
    %237 = arith.negf %236 : vector<8x128xf32>
    %238 = math.exp %237 : vector<8x128xf32>
    %cst_63 = arith.constant 1.000000e+00 : f32
    %239 = vector.broadcast %cst_63 : f32 to vector<8x128xf32>
    %240 = arith.addf %239, %238 : vector<8x128xf32>
    %241 = arith.divf %239, %240 : vector<8x128xf32>
    %242 = vector.extract_strided_slice %229 {offsets = [0, 256], sizes = [8, 128], strides = [1, 1]} : vector<8x512xf32> to vector<8x128xf32>
    %243 = math.tanh %242 : vector<8x128xf32>
    %244 = vector.extract_strided_slice %229 {offsets = [0, 384], sizes = [8, 128], strides = [1, 1]} : vector<8x512xf32> to vector<8x128xf32>
    %245 = arith.negf %244 : vector<8x128xf32>
    %246 = math.exp %245 : vector<8x128xf32>
    %cst_64 = arith.constant 1.000000e+00 : f32
    %247 = vector.broadcast %cst_64 : f32 to vector<8x128xf32>
    %248 = arith.addf %247, %246 : vector<8x128xf32>
    %249 = arith.divf %247, %248 : vector<8x128xf32>
    %250 = arith.mulf %241, %222 : vector<8x128xf32>
    %251 = arith.mulf %235, %243 : vector<8x128xf32>
    %252 = arith.addf %250, %251 : vector<8x128xf32>
    %253 = math.tanh %252 : vector<8x128xf32>
    %254 = arith.mulf %249, %253 : vector<8x128xf32>
    %c8_i32 = arith.constant 8 : i32
    %c0_65 = arith.constant 0 : index
    %c0_66 = arith.constant 0 : index
    %255 = vector.load %arg8[%c0_65, %c0_66] : memref<8x128xf32, #tpu.memory_space<vmem>>, vector<8x128xf32>
    tpu.vector_store %arg8[%c0_65, %c0_66], %254 {strides = array<i32>} : memref<8x128xf32, #tpu.memory_space<vmem>>, vector<8x128xf32>,
    %c0_67 = arith.constant 0 : index
    %c0_68 = arith.constant 0 : index
    %256 = vector.load %arg9[%c0_67, %c0_68] : memref<8x128xf32, #tpu.memory_space<vmem>>, vector<8x128xf32>
    tpu.vector_store %arg9[%c0_67, %c0_68], %252 {strides = array<i32>} : memref<8x128xf32, #tpu.memory_space<vmem>>, vector<8x128xf32>,
    %c0_i32_69 = arith.constant 0 : i32
    %257 = arith.cmpi eq, %arg1, %c0_i32_69 : i32
    %258 = arith.extui %257 : i1 to i32
    %c0_i32_70 = arith.constant 0 : i32
    %259 = arith.cmpi ne, %258, %c0_i32_70 : i32
    scf.if %259 {
      %c0_71 = arith.constant 0 : index
      %c0_72 = arith.constant 0 : index
      %260 = vector.load %arg8[%c0_71, %c0_72] : memref<8x128xf32, #tpu.memory_space<vmem>>, vector<8x128xf32>
      %c0_73 = arith.constant 0 : index
      %c0_74 = arith.constant 0 : index
      %261 = vector.load %arg6[%c0_73, %c0_74] : memref<8x128xf32, #tpu.memory_space<vmem>>, vector<8x128xf32>
      tpu.vector_store %arg6[%c0_73, %c0_74], %260 {strides = array<i32>} : memref<8x128xf32, #tpu.memory_space<vmem>>, vector<8x128xf32>,
    } else {
    }
    return
  }
  func.func @transform_0(%arg0: i32, %arg1: i32) -> (i32, i32, i32) {
    %c0_i32 = arith.constant 0 : i32
    %c0_i32_0 = arith.constant 0 : i32
    return %arg1, %arg0, %c0_i32 : i32, i32, i32
  }
  func.func @transform_1(%arg0: i32, %arg1: i32) -> (i32, i32) {
    %c0_i32 = arith.constant 0 : i32
    %c0_i32_0 = arith.constant 0 : i32
    %c0_i32_1 = arith.constant 0 : i32
    return %c0_i32, %c0_i32_0 : i32, i32
  }
  func.func @transform_2(%arg0: i32, %arg1: i32) -> (i32, i32) {
    %c0_i32 = arith.constant 0 : i32
    %c0_i32_0 = arith.constant 0 : i32
    %c0_i32_1 = arith.constant 0 : i32
    return %c0_i32, %c0_i32_0 : i32, i32
  }
  func.func @transform_3(%arg0: i32, %arg1: i32) -> (i32, i32) {
    %c0_i32 = arith.constant 0 : i32
    %c0_i32_0 = arith.constant 0 : i32
    %c0_i32_1 = arith.constant 0 : i32
    return %c0_i32, %c0_i32_0 : i32, i32
  }
  func.func @transform_4(%arg0: i32, %arg1: i32) -> (i32, i32) {
    %c0_i32 = arith.constant 0 : i32
    %c0_i32_0 = arith.constant 0 : i32
    return %arg0, %c0_i32 : i32, i32
  }
}

</mosaic_0001>

<llo_original>
// kernel: tpu_custom_call.1
$region0: #{tpu_custom_call.1}
  #allocation0 [shape = 'u32[]', space=smem, size = 0x4, offset = 0x4, fixed_abs, tag = 'smem constant byte address 0x4 - core index']
  #allocation1 [shape = 'u32[72,128]{1,0:T(1,128)}', space=vmem, size = 0x9000, scoped, tag = 'internal scratch']
  #allocation2 [shape = 'f32[8,8,512]{2,1,0:T(8,128)}', space=vmem, size = 0x20000, scoped, tag = 'scratch operand']
  #allocation3 [shape = 'f32[8,128]{1,0:T(8,128)}', space=vmem, size = 0x1000, scoped, tag = 'scratch operand']
  #allocation4 [shape = 'f32[8,128]{1,0:T(8,128)}', space=vmem, size = 0x1000, scoped, tag = 'scratch operand']
  %s0 = inlined_call_operand.hbm [shape: f32[8,8,16], index: 0, kind: input, shape index: {}]
  %s1 = inlined_call_operand.hbm [shape: f32[16,512], index: 1, kind: input, shape index: {}]
  %s2 = inlined_call_operand.hbm [shape: f32[128,512], index: 2, kind: input, shape index: {}]
  %s3 = inlined_call_operand.hbm [shape: f32[1,512], index: 3, kind: input, shape index: {}]
  %s4 = inlined_call_operand.hbm [shape: f32[8,128], index: 4, kind: output, shape index: {}]
  %s5 = sld [smem:[#allocation0]]
  $region50: #{tpu_custom_call.1} parent=0
    _
  %s7 = ssub.s32 1, %s5
  %s8 = scalar_select 0, %s7, %s5
  $region1: #{tpu_custom_call.1} parent=0
    #allocation5 [shape = 'u8[32768]{0}', space=vmem, size = 0x8000, scoped, tag = 'input window, operand 0, single buffered']
    #allocation6 [shape = 's32[1]{0}', space=sflag, size = 0x4, scoped, tag = 'scoped memory for tpu_custom_call.1']
    #allocation7 [shape = 's32[1]{0}', space=sflag, size = 0x4, scoped, tag = 'scoped memory for tpu_custom_call.1']
    #allocation8 [shape = 'u8[32768]{0}', space=vmem, size = 0x8000, scoped, tag = 'input window, operand 1, single buffered']
    #allocation9 [shape = 's32[1]{0}', space=sflag, size = 0x4, scoped, tag = 'scoped memory for tpu_custom_call.1']
    #allocation10 [shape = 'u8[262144]{0}', space=vmem, size = 0x40000, scoped, tag = 'input window, operand 2, single buffered']
    #allocation11 [shape = 'u8[2048]{0}', space=vmem, size = 0x800, scoped, tag = 'input window, operand 3, single buffered']
    #allocation12 [shape = 's32[1]{0}', space=sflag, size = 0x4, scoped, tag = 'scoped memory for tpu_custom_call.1']
    #allocation13 [shape = 'u8[4096]{0}', space=vmem, size = 0x1000, scoped, tag = 'output window, operand 0, single buffered']
    %9 = vsyncpa [#allocation6], 0
    %10 = vsyncpa [#allocation9], 0
    %11 = vsyncpa [#allocation12], 0
    %12 = vsyncpa [#allocation7], 0
    // Predicated region
    $region2: #{tpu_custom_call.1} parent=1 // pred_check
      _
    $region3: #{tpu_custom_call.1} parent=1 // pred_check_branch
      %14 = sbr.rel (0) target = $region5
    $region4: #{tpu_custom_call.1} parent=1 // pred_region
      %16 = vsyncadd [#allocation6], 0
      %s17 = sshll.u32 %s0, 4
      %s18 = int_to_ptr.hbm [resolvable:$true] %s17
      %s19 = sshll.u32 [#allocation5], 4
      %s20 = int_to_ptr.vmem [resolvable:$true] %s19
      %25 = dma.hbm_to_vmem [thread:$0]  %s18, 1024, %s20, [#allocation6], 128, 128, 8
    $region5: #{tpu_custom_call.1} parent=1 // pred_fallthru
      _
    // Predicated region
    $region6: #{tpu_custom_call.1} parent=1 // pred_check
      _
    $region7: #{tpu_custom_call.1} parent=1 // pred_check_branch
      %27 = sbr.rel (0) target = $region9
    $region8: #{tpu_custom_call.1} parent=1 // pred_region
      %29 = vsyncadd [#allocation9], 0
      %s30 = sshll.u32 %s1, 4
      %s31 = int_to_ptr.hbm [resolvable:$true] %s30
      %s32 = sshll.u32 [#allocation8], 4
      %s33 = int_to_ptr.vmem [resolvable:$true] %s32
      %38 = dma.hbm_to_vmem [thread:$0]  %s31, 1024, %s33, [#allocation9], 512, 512, 32
    $region9: #{tpu_custom_call.1} parent=1 // pred_fallthru
      _
    // Predicated region
    $region10: #{tpu_custom_call.1} parent=1 // pred_check
      _
    $region11: #{tpu_custom_call.1} parent=1 // pred_check_branch
      %40 = sbr.rel (0) target = $region13
    $region12: #{tpu_custom_call.1} parent=1 // pred_region
      %42 = vsyncadd [#allocation9], 0
      %s43 = sshll.u32 %s2, 4
      %s44 = int_to_ptr.hbm [resolvable:$true] %s43
      %s45 = sshll.u32 [#allocation10], 4
      %s46 = int_to_ptr.vmem [resolvable:$true] %s45
      %51 = dma.hbm_to_vmem [thread:$0]  %s44, 8192, %s46, [#allocation9], 512, 512, 32
    $region13: #{tpu_custom_call.1} parent=1 // pred_fallthru
      _
    // Predicated region
    $region14: #{tpu_custom_call.1} parent=1 // pred_check
      _
    $region15: #{tpu_custom_call.1} parent=1 // pred_check_branch
      %53 = sbr.rel (0) target = $region17
    $region16: #{tpu_custom_call.1} parent=1 // pred_region
      %55 = vsyncadd [#allocation12], 0
      %s57 = sshll.u32 %s3, 4
      %s58 = int_to_ptr.hbm [resolvable:$true] %s57
      %s59 = sshll.u32 [#allocation11], 4
      %s60 = int_to_ptr.vmem [resolvable:$true] %s59
      %62 = dma.hbm_to_vmem [thread:$0]  %s58, 64, %s60, [#allocation12]
    $region17: #{tpu_custom_call.1} parent=1 // pred_fallthru
      _
    // Predicated region
    $region18: #{tpu_custom_call.1} parent=1 // pred_check
      _
    $region19: #{tpu_custom_call.1} parent=1 // pred_check_branch
      %64 = sbr.rel (0) target = $region21
    $region20: #{tpu_custom_call.1} parent=1 // pred_region
      %66 = dma.done [#allocation6], 1024
    $region21: #{tpu_custom_call.1} parent=1 // pred_fallthru
      _
    // Predicated region
    $region22: #{tpu_custom_call.1} parent=1 // pred_check
      _
    $region23: #{tpu_custom_call.1} parent=1 // pred_check_branch
      %68 = sbr.rel (0) target = $region25
    $region24: #{tpu_custom_call.1} parent=1 // pred_region
      %70 = dma.done [#allocation9], 1024
    $region25: #{tpu_custom_call.1} parent=1 // pred_fallthru
      _
    // Predicated region
    $region26: #{tpu_custom_call.1} parent=1 // pred_check
      _
    $region27: #{tpu_custom_call.1} parent=1 // pred_check_branch
      %72 = sbr.rel (0) target = $region29
    $region28: #{tpu_custom_call.1} parent=1 // pred_region
      %74 = dma.done [#allocation9], 8192
    $region29: #{tpu_custom_call.1} parent=1 // pred_fallthru
      _
    // Predicated region
    $region30: #{tpu_custom_call.1} parent=1 // pred_check
      _
    $region31: #{tpu_custom_call.1} parent=1 // pred_check_branch
      %76 = sbr.rel (0) target = $region33
    $region32: #{tpu_custom_call.1} parent=1 // pred_region
      %78 = dma.done [#allocation12], 64
    $region33: #{tpu_custom_call.1} parent=1 // pred_fallthru
      _
    %p79 = scmp.eq.s32.totalorder 0, 0
    // Predicated region
    $region34: #{tpu_custom_call.1} parent=1 // pred_check
      %p80 = pneg %p79
    $region35: #{tpu_custom_call.1} parent=1 // pred_check_branch
      %82 = sbr.rel (%p80) target = $region37
    $region36: #{tpu_custom_call.1} parent=1 // pred_region
      %83 = vst [vmem:[#allocation3] sm:$0xff] 0.0
      %84 = vst [vmem:[#allocation4] sm:$0xff] 0.0
    $region37: #{tpu_custom_call.1} parent=1 // pred_fallthru
      _
    %v85 = vld [vmem:[#allocation5] sm:$0xff]
    %v86 = vld [vmem:[#allocation5 + $0x8] sm:$0xff]
    %v87 = vld [vmem:[#allocation5 + $0x10] sm:$0xff]
    %v88 = vld [vmem:[#allocation5 + $0x18] sm:$0xff]
    %v89 = vld [vmem:[#allocation5 + $0x20] sm:$0xff]
    %v90 = vld [vmem:[#allocation5 + $0x28] sm:$0xff]
    %v91 = vld [vmem:[#allocation5 + $0x30] sm:$0xff]
    %v92 = vld [vmem:[#allocation5 + $0x38] sm:$0xff]
    %v93 = vld [vmem:[#allocation8] sm:$0xff]
    %v94 = vld [vmem:[#allocation8 + $0x8] sm:$0xff]
    %v95 = vld [vmem:[#allocation8 + $0x10] sm:$0xff]
    %v96 = vld [vmem:[#allocation8 + $0x18] sm:$0xff]
    %v97 = vld [vmem:[#allocation8 + $0x20] sm:$0xff]
    %v98 = vld [vmem:[#allocation8 + $0x28] sm:$0xff]
    %v99 = vld [vmem:[#allocation8 + $0x30] sm:$0xff]
    %v100 = vld [vmem:[#allocation8 + $0x38] sm:$0xff]
    %v101 = vld [vmem:[#allocation11] sm:$0xf]
    %v103 = vperm.slane %v101, 0
    %v104 = vperm.slane %v101, 1
    %v105 = vperm.slane %v101, 2
    %v106 = vperm.slane %v101, 3
    %vm111 = vcmask 130048
    %v113 = vsel %vm111, %v85, 0
    %v116 = vsel %vm111, %v86, 0
    %v119 = vsel %vm111, %v87, 0
    %v122 = vsel %vm111, %v88, 0
    %v125 = vsel %vm111, %v89, 0
    %v128 = vsel %vm111, %v90, 0
    %v131 = vsel %vm111, %v91, 0
    %v134 = vsel %vm111, %v92, 0
    %136 = vmatpush.msra.mxu0 0.0
    %137 = vmatpush.msra.mxu0 0.0
    %138 = vmatpush.msra.mxu0 0.0
    %139 = vmatpush.msra.mxu0 0.0
    %140 = vmatpush.msra.mxu0 0.0
    %141 = vmatpush.msra.mxu0 0.0
    %142 = vmatpush.msra.mxu0 0.0
    %143 = vmatpush.msra.mxu0 0.0
    %144 = vmatpush.msra.mxu0 0.0
    %145 = vmatpush.msra.mxu0 0.0
    %146 = vmatpush.msra.mxu0 0.0
    %147 = vmatpush.msra.mxu0 0.0
    %148 = vmatpush.msra.mxu0 0.0
    %149 = vmatpush.msra.mxu0 0.0
    %150 = vmatpush.msra.mxu0 %v97
    %151 = vmatpush.msra.mxu0 %v93
    %152 = vmatmul.f32.gmra.mxu0 %v113
    %v153 = vpop.f32.mrf.mxu0
    %v154 = vadd.f32 %v103, %v153
    %155 = vmatmul.f32.gmra.mxu0 %v116
    %v156 = vpop.f32.mrf.mxu0
    %v157 = vadd.f32 %v103, %v156
    %158 = vmatmul.f32.gmra.mxu0 %v119
    %v159 = vpop.f32.mrf.mxu0
    %v160 = vadd.f32 %v103, %v159
    %161 = vmatmul.f32.gmra.mxu0 %v122
    %v162 = vpop.f32.mrf.mxu0
    %v163 = vadd.f32 %v103, %v162
    %164 = vmatmul.f32.gmra.mxu0 %v125
    %v165 = vpop.f32.mrf.mxu0
    %v166 = vadd.f32 %v103, %v165
    %167 = vmatmul.f32.gmra.mxu0 %v128
    %v168 = vpop.f32.mrf.mxu0
    %v169 = vadd.f32 %v103, %v168
    %170 = vmatmul.f32.gmra.mxu0 %v131
    %v171 = vpop.f32.mrf.mxu0
    %v172 = vadd.f32 %v103, %v171
    %173 = vmatmul.f32.gmra.mxu0 %v134
    %v174 = vpop.f32.mrf.mxu0
    %v175 = vadd.f32 %v103, %v174
    %176 = vdwg.mxu0
    %177 = vmatpush.msra.mxu0 0.0
    %178 = vmatpush.msra.mxu0 0.0
    %179 = vmatpush.msra.mxu0 0.0
    %180 = vmatpush.msra.mxu0 0.0
    %181 = vmatpush.msra.mxu0 0.0
    %182 = vmatpush.msra.mxu0 0.0
    %183 = vmatpush.msra.mxu0 0.0
    %184 = vmatpush.msra.mxu0 0.0
    %185 = vmatpush.msra.mxu0 0.0
    %186 = vmatpush.msra.mxu0 0.0
    %187 = vmatpush.msra.mxu0 0.0
    %188 = vmatpush.msra.mxu0 0.0
    %189 = vmatpush.msra.mxu0 0.0
    %190 = vmatpush.msra.mxu0 0.0
    %191 = vmatpush.msra.mxu0 %v98
    %192 = vmatpush.msra.mxu0 %v94
    %193 = vmatmul.f32.gmra.mxu0 %v113
    %v194 = vpop.f32.mrf.mxu0
    %v195 = vadd.f32 %v104, %v194
    %196 = vmatmul.f32.gmra.mxu0 %v116
    %v197 = vpop.f32.mrf.mxu0
    %v198 = vadd.f32 %v104, %v197
    %199 = vmatmul.f32.gmra.mxu0 %v119
    %v200 = vpop.f32.mrf.mxu0
    %v201 = vadd.f32 %v104, %v200
    %202 = vmatmul.f32.gmra.mxu0 %v122
    %v203 = vpop.f32.mrf.mxu0
    %v204 = vadd.f32 %v104, %v203
    %205 = vmatmul.f32.gmra.mxu0 %v125
    %v206 = vpop.f32.mrf.mxu0
    %v207 = vadd.f32 %v104, %v206
    %208 = vmatmul.f32.gmra.mxu0 %v128
    %v209 = vpop.f32.mrf.mxu0
    %v210 = vadd.f32 %v104, %v209
    %211 = vmatmul.f32.gmra.mxu0 %v131
    %v212 = vpop.f32.mrf.mxu0
    %v213 = vadd.f32 %v104, %v212
    %214 = vmatmul.f32.gmra.mxu0 %v134
    %v215 = vpop.f32.mrf.mxu0
    %v216 = vadd.f32 %v104, %v215
    %217 = vdwg.mxu0
    %218 = vmatpush.msra.mxu0 0.0
    %219 = vmatpush.msra.mxu0 0.0
    %220 = vmatpush.msra.mxu0 0.0
    %221 = vmatpush.msra.mxu0 0.0
    %222 = vmatpush.msra.mxu0 0.0
    %223 = vmatpush.msra.mxu0 0.0
    %224 = vmatpush.msra.mxu0 0.0
    %225 = vmatpush.msra.mxu0 0.0
    %226 = vmatpush.msra.mxu0 0.0
    %227 = vmatpush.msra.mxu0 0.0
    %228 = vmatpush.msra.mxu0 0.0
    %229 = vmatpush.msra.mxu0 0.0
    %230 = vmatpush.msra.mxu0 0.0
    %231 = vmatpush.msra.mxu0 0.0
    %232 = vmatpush.msra.mxu0 %v99
    %233 = vmatpush.msra.mxu0 %v95
    %234 = vmatmul.f32.gmra.mxu0 %v113
    %v235 = vpop.f32.mrf.mxu0
    %v236 = vadd.f32 %v105, %v235
    %237 = vmatmul.f32.gmra.mxu0 %v116
    %v238 = vpop.f32.mrf.mxu0
    %v239 = vadd.f32 %v105, %v238
    %240 = vmatmul.f32.gmra.mxu0 %v119
    %v241 = vpop.f32.mrf.mxu0
    %v242 = vadd.f32 %v105, %v241
    %243 = vmatmul.f32.gmra.mxu0 %v122
    %v244 = vpop.f32.mrf.mxu0
    %v245 = vadd.f32 %v105, %v244
    %246 = vmatmul.f32.gmra.mxu0 %v125
    %v247 = vpop.f32.mrf.mxu0
    %v248 = vadd.f32 %v105, %v247
    %249 = vmatmul.f32.gmra.mxu0 %v128
    %v250 = vpop.f32.mrf.mxu0
    %v251 = vadd.f32 %v105, %v250
    %252 = vmatmul.f32.gmra.mxu0 %v131
    %v253 = vpop.f32.mrf.mxu0
    %v254 = vadd.f32 %v105, %v253
    %255 = vmatmul.f32.gmra.mxu0 %v134
    %v256 = vpop.f32.mrf.mxu0
    %v257 = vadd.f32 %v105, %v256
    %258 = vdwg.mxu0
    %259 = vmatpush.msra.mxu0 0.0
    %260 = vmatpush.msra.mxu0 0.0
    %261 = vmatpush.msra.mxu0 0.0
    %262 = vmatpush.msra.mxu0 0.0
    %263 = vmatpush.msra.mxu0 0.0
    %264 = vmatpush.msra.mxu0 0.0
    %265 = vmatpush.msra.mxu0 0.0
    %266 = vmatpush.msra.mxu0 0.0
    %267 = vmatpush.msra.mxu0 0.0
    %268 = vmatpush.msra.mxu0 0.0
    %269 = vmatpush.msra.mxu0 0.0
    %270 = vmatpush.msra.mxu0 0.0
    %271 = vmatpush.msra.mxu0 0.0
    %272 = vmatpush.msra.mxu0 0.0
    %273 = vmatpush.msra.mxu0 %v100
    %274 = vmatpush.msra.mxu0 %v96
    %275 = vmatmul.f32.gmra.mxu0 %v113
    %v276 = vpop.f32.mrf.mxu0
    %v277 = vadd.f32 %v106, %v276
    %278 = vmatmul.f32.gmra.mxu0 %v116
    %v279 = vpop.f32.mrf.mxu0
    %v280 = vadd.f32 %v106, %v279
    %281 = vmatmul.f32.gmra.mxu0 %v119
    %v282 = vpop.f32.mrf.mxu0
    %v283 = vadd.f32 %v106, %v282
    %284 = vmatmul.f32.gmra.mxu0 %v122
    %v285 = vpop.f32.mrf.mxu0
    %v286 = vadd.f32 %v106, %v285
    %287 = vmatmul.f32.gmra.mxu0 %v125
    %v288 = vpop.f32.mrf.mxu0
    %v289 = vadd.f32 %v106, %v288
    %290 = vmatmul.f32.gmra.mxu0 %v128
    %v291 = vpop.f32.mrf.mxu0
    %v292 = vadd.f32 %v106, %v291
    %293 = vmatmul.f32.gmra.mxu0 %v131
    %v294 = vpop.f32.mrf.mxu0
    %v295 = vadd.f32 %v106, %v294
    %296 = vmatmul.f32.gmra.mxu0 %v134
    %v297 = vpop.f32.mrf.mxu0
    %v298 = vadd.f32 %v106, %v297
    %299 = vdwg.mxu0
    %300 = vst [vmem:[#allocation2] sm:$0xff] %v154
    %301 = vst [vmem:[#allocation2 + $0x8] sm:$0xff] %v195
    %302 = vst [vmem:[#allocation2 + $0x10] sm:$0xff] %v236
    %303 = vst [vmem:[#allocation2 + $0x18] sm:$0xff] %v277
    %304 = vst [vmem:[#allocation2 + $0x20] sm:$0xff] %v157
    %305 = vst [vmem:[#allocation2 + $0x28] sm:$0xff] %v198
    %306 = vst [vmem:[#allocation2 + $0x30] sm:$0xff] %v239
    %307 = vst [vmem:[#allocation2 + $0x38] sm:$0xff] %v280
    %308 = vst [vmem:[#allocation2 + $0x40] sm:$0xff] %v160
    %309 = vst [vmem:[#allocation2 + $0x48] sm:$0xff] %v201
    %310 = vst [vmem:[#allocation2 + $0x50] sm:$0xff] %v242
    %311 = vst [vmem:[#allocation2 + $0x58] sm:$0xff] %v283
    %312 = vst [vmem:[#allocation2 + $0x60] sm:$0xff] %v163
    %313 = vst [vmem:[#allocation2 + $0x68] sm:$0xff] %v204
    %314 = vst [vmem:[#allocation2 + $0x70] sm:$0xff] %v245
    %315 = vst [vmem:[#allocation2 + $0x78] sm:$0xff] %v286
    %316 = vst [vmem:[#allocation2 + $0x80] sm:$0xff] %v166
    %317 = vst [vmem:[#allocation2 + $0x88] sm:$0xff] %v207
    %318 = vst [vmem:[#allocation2 + $0x90] sm:$0xff] %v248
    %319 = vst [vmem:[#allocation2 + $0x98] sm:$0xff] %v289
    %320 = vst [vmem:[#allocation2 + $0xa0] sm:$0xff] %v169
    %321 = vst [vmem:[#allocation2 + $0xa8] sm:$0xff] %v210
    %322 = vst [vmem:[#allocation2 + $0xb0] sm:$0xff] %v251
    %323 = vst [vmem:[#allocation2 + $0xb8] sm:$0xff] %v292
    %324 = vst [vmem:[#allocation2 + $0xc0] sm:$0xff] %v172
    %325 = vst [vmem:[#allocation2 + $0xc8] sm:$0xff] %v213
    %326 = vst [vmem:[#allocation2 + $0xd0] sm:$0xff] %v254
    %327 = vst [vmem:[#allocation2 + $0xd8] sm:$0xff] %v295
    %328 = vst [vmem:[#allocation2 + $0xe0] sm:$0xff] %v175
    %329 = vst [vmem:[#allocation2 + $0xe8] sm:$0xff] %v216
    %330 = vst [vmem:[#allocation2 + $0xf0] sm:$0xff] %v257
    %331 = vst [vmem:[#allocation2 + $0xf8] sm:$0xff] %v298
    %v332 = vld [vmem:[#allocation10] sm:$0xff]
    %v333 = vld [vmem:[#allocation10 + $0x8] sm:$0xff]
    %v334 = vld [vmem:[#allocation10 + $0x10] sm:$0xff]
    %v335 = vld [vmem:[#allocation10 + $0x18] sm:$0xff]
    %v336 = vld [vmem:[#allocation10 + $0x20] sm:$0xff]
    %v337 = vld [vmem:[#allocation10 + $0x28] sm:$0xff]
    %v338 = vld [vmem:[#allocation10 + $0x30] sm:$0xff]
    %v339 = vld [vmem:[#allocation10 + $0x38] sm:$0xff]
    %v340 = vld [vmem:[#allocation10 + $0x40] sm:$0xff]
    %v341 = vld [vmem:[#allocation10 + $0x48] sm:$0xff]
    %v342 = vld [vmem:[#allocation10 + $0x50] sm:$0xff]
    %v343 = vld [vmem:[#allocation10 + $0x58] sm:$0xff]
    %v344 = vld [vmem:[#allocation10 + $0x60] sm:$0xff]
    %v345 = vld [vmem:[#allocation10 + $0x68] sm:$0xff]
    %v346 = vld [vmem:[#allocation10 + $0x70] sm:$0xff]
    %v347 = vld [vmem:[#allocation10 + $0x78] sm:$0xff]
    %v348 = vld [vmem:[#allocation10 + $0x80] sm:$0xff]
    %v349 = vld [vmem:[#allocation10 + $0x88] sm:$0xff]
    %v350 = vld [vmem:[#allocation10 + $0x90] sm:$0xff]
    %v351 = vld [vmem:[#allocation10 + $0x98] sm:$0xff]
    %v352 = vld [vmem:[#allocation10 + $0xa0] sm:$0xff]
    %v353 = vld [vmem:[#allocation10 + $0xa8] sm:$0xff]
    %v354 = vld [vmem:[#allocation10 + $0xb0] sm:$0xff]
    %v355 = vld [vmem:[#allocation10 + $0xb8] sm:$0xff]
    %v356 = vld [vmem:[#allocation10 + $0xc0] sm:$0xff]
    %v357 = vld [vmem:[#allocation10 + $0xc8] sm:$0xff]
    %v358 = vld [vmem:[#allocation10 + $0xd0] sm:$0xff]
    %v359 = vld [vmem:[#allocation10 + $0xd8] sm:$0xff]
    %v360 = vld [vmem:[#allocation10 + $0xe0] sm:$0xff]
    %v361 = vld [vmem:[#allocation10 + $0xe8] sm:$0xff]
    %v362 = vld [vmem:[#allocation10 + $0xf0] sm:$0xff]
    %v363 = vld [vmem:[#allocation10 + $0xf8] sm:$0xff]
    %v364 = vld [vmem:[#allocation10 + $0x100] sm:$0xff]
    %v365 = vld [vmem:[#allocation10 + $0x108] sm:$0xff]
    %v366 = vld [vmem:[#allocation10 + $0x110] sm:$0xff]
    %v367 = vld [vmem:[#allocation10 + $0x118] sm:$0xff]
    %v368 = vld [vmem:[#allocation10 + $0x120] sm:$0xff]
    %v369 = vld [vmem:[#allocation10 + $0x128] sm:$0xff]
    %v370 = vld [vmem:[#allocation10 + $0x130] sm:$0xff]
    %v371 = vld [vmem:[#allocation10 + $0x138] sm:$0xff]
    %v372 = vld [vmem:[#allocation10 + $0x140] sm:$0xff]
    %v373 = vld [vmem:[#allocation10 + $0x148] sm:$0xff]
    %v374 = vld [vmem:[#allocation10 + $0x150] sm:$0xff]
    %v375 = vld [vmem:[#allocation10 + $0x158] sm:$0xff]
    %v376 = vld [vmem:[#allocation10 + $0x160] sm:$0xff]
    %v377 = vld [vmem:[#allocation10 + $0x168] sm:$0xff]
    %v378 = vld [vmem:[#allocation10 + $0x170] sm:$0xff]
    %v379 = vld [vmem:[#allocation10 + $0x178] sm:$0xff]
    %v380 = vld [vmem:[#allocation10 + $0x180] sm:$0xff]
    %v381 = vld [vmem:[#allocation10 + $0x188] sm:$0xff]
    %v382 = vld [vmem:[#allocation10 + $0x190] sm:$0xff]
    %v383 = vld [vmem:[#allocation10 + $0x198] sm:$0xff]
    %v384 = vld [vmem:[#allocation10 + $0x1a0] sm:$0xff]
    %v385 = vld [vmem:[#allocation10 + $0x1a8] sm:$0xff]
    %v386 = vld [vmem:[#allocation10 + $0x1b0] sm:$0xff]
    %v387 = vld [vmem:[#allocation10 + $0x1b8] sm:$0xff]
    %v388 = vld [vmem:[#allocation10 + $0x1c0] sm:$0xff]
    %v389 = vld [vmem:[#allocation10 + $0x1c8] sm:$0xff]
    %v390 = vld [vmem:[#allocation10 + $0x1d0] sm:$0xff]
    %v391 = vld [vmem:[#allocation10 + $0x1d8] sm:$0xff]
    %v392 = vld [vmem:[#allocation10 + $0x1e0] sm:$0xff]
    %v393 = vld [vmem:[#allocation10 + $0x1e8] sm:$0xff]
    %v394 = vld [vmem:[#allocation10 + $0x1f0] sm:$0xff]
    %v395 = vld [vmem:[#allocation10 + $0x1f8] sm:$0xff]
    %v396 = vld [vmem:[#allocation3] sm:$0xff]
    %v397 = vld [vmem:[#allocation4] sm:$0xff]
    %v398 = vld [vmem:[#allocation2] sm:$0xff]
    %v399 = vld [vmem:[#allocation2 + $0x8] sm:$0xff]
    %v400 = vld [vmem:[#allocation2 + $0x10] sm:$0xff]
    %v401 = vld [vmem:[#allocation2 + $0x18] sm:$0xff]
    %402 = vmatpush.msra.mxu0 %v392
    %403 = vmatpush.msra.mxu0 %v388
    %404 = vmatpush.msra.mxu0 %v384
    %405 = vmatpush.msra.mxu0 %v380
    %406 = vmatpush.msra.mxu0 %v376
    %407 = vmatpush.msra.mxu0 %v372
    %408 = vmatpush.msra.mxu0 %v368
    %409 = vmatpush.msra.mxu0 %v364
    %410 = vmatpush.msra.mxu0 %v360
    %411 = vmatpush.msra.mxu0 %v356
    %412 = vmatpush.msra.mxu0 %v352
    %413 = vmatpush.msra.mxu0 %v348
    %414 = vmatpush.msra.mxu0 %v344
    %415 = vmatpush.msra.mxu0 %v340
    %416 = vmatpush.msra.mxu0 %v336
    %417 = vmatpush.msra.mxu0 %v332
    %418 = vmatmul.f32.gmra.mxu0 %v396
    %v419 = vpop.f32.mrf.mxu0
    %v420 = vadd.f32 0.0, %v419
    %421 = vdwg.mxu0
    %422 = vmatpush.msra.mxu0 %v393
    %423 = vmatpush.msra.mxu0 %v389
    %424 = vmatpush.msra.mxu0 %v385
    %425 = vmatpush.msra.mxu0 %v381
    %426 = vmatpush.msra.mxu0 %v377
    %427 = vmatpush.msra.mxu0 %v373
    %428 = vmatpush.msra.mxu0 %v369
    %429 = vmatpush.msra.mxu0 %v365
    %430 = vmatpush.msra.mxu0 %v361
    %431 = vmatpush.msra.mxu0 %v357
    %432 = vmatpush.msra.mxu0 %v353
    %433 = vmatpush.msra.mxu0 %v349
    %434 = vmatpush.msra.mxu0 %v345
    %435 = vmatpush.msra.mxu0 %v341
    %436 = vmatpush.msra.mxu0 %v337
    %437 = vmatpush.msra.mxu0 %v333
    %438 = vmatmul.f32.gmra.mxu0 %v396
    %v439 = vpop.f32.mrf.mxu0
    %v440 = vadd.f32 0.0, %v439
    %441 = vdwg.mxu0
    %442 = vmatpush.msra.mxu0 %v394
    %443 = vmatpush.msra.mxu0 %v390
    %444 = vmatpush.msra.mxu0 %v386
    %445 = vmatpush.msra.mxu0 %v382
    %446 = vmatpush.msra.mxu0 %v378
    %447 = vmatpush.msra.mxu0 %v374
    %448 = vmatpush.msra.mxu0 %v370
    %449 = vmatpush.msra.mxu0 %v366
    %450 = vmatpush.msra.mxu0 %v362
    %451 = vmatpush.msra.mxu0 %v358
    %452 = vmatpush.msra.mxu0 %v354
    %453 = vmatpush.msra.mxu0 %v350
    %454 = vmatpush.msra.mxu0 %v346
    %455 = vmatpush.msra.mxu0 %v342
    %456 = vmatpush.msra.mxu0 %v338
    %457 = vmatpush.msra.mxu0 %v334
    %458 = vmatmul.f32.gmra.mxu0 %v396
    %v459 = vpop.f32.mrf.mxu0
    %v460 = vadd.f32 0.0, %v459
    %461 = vdwg.mxu0
    %462 = vmatpush.msra.mxu0 %v395
    %463 = vmatpush.msra.mxu0 %v391
    %464 = vmatpush.msra.mxu0 %v387
    %465 = vmatpush.msra.mxu0 %v383
    %466 = vmatpush.msra.mxu0 %v379
    %467 = vmatpush.msra.mxu0 %v375
    %468 = vmatpush.msra.mxu0 %v371
    %469 = vmatpush.msra.mxu0 %v367
    %470 = vmatpush.msra.mxu0 %v363
    %471 = vmatpush.msra.mxu0 %v359
    %472 = vmatpush.msra.mxu0 %v355
    %473 = vmatpush.msra.mxu0 %v351
    %474 = vmatpush.msra.mxu0 %v347
    %475 = vmatpush.msra.mxu0 %v343
    %476 = vmatpush.msra.mxu0 %v339
    %477 = vmatpush.msra.mxu0 %v335
    %478 = vmatmul.f32.gmra.mxu0 %v396
    %v479 = vpop.f32.mrf.mxu0
    %v480 = vadd.f32 0.0, %v479
    %481 = vdwg.mxu0
    %v482 = vadd.f32 %v398, %v420
    %v483 = vadd.f32 %v399, %v440
    %v484 = vadd.f32 %v400, %v460
    %v485 = vadd.f32 %v401, %v480
    %v486 = vxor.u32 %v482, 2147483648
    %v487 = vmul.f32 %v486, 1.442695
    %v488 = vpow.pop %v487
    %v489 = vadd.f32 %v488, 1.0
    %v490 = vrcp.pop %v489
    %v491 = vmul.f32 %v489, %v490
    %v492 = vsub.f32 1.0, %v491
    %v493 = vmul.f32 %v490, %v492
    %v494 = vadd.f32 %v490, %v493
    %vm495 = vweird.f32 %v489
    %vm496 = vweird.f32 %v490
    %vm497 = vmor %vm495, %vm496
    %v498 = vsel %vm497, %v490, %v494
    %v499 = vand.u32 2147483647, %v489
    %vm500 = vcmp.eq.f32.partialorder %v499, 8.507059e+37
    %v501 = vand.u32 %v489, 2147483648
    %v502 = vor.u32 1.1754944e-38, %v501
    %v503 = vsel %vm500, %v502, %v498
    %v504 = vmul.f32 1.0, %v503
    %v505 = vxor.u32 %v483, 2147483648
    %v506 = vmul.f32 %v505, 1.442695
    %v507 = vpow.pop %v506
    %v508 = vadd.f32 %v507, 1.0
    %v509 = vrcp.pop %v508
    %v510 = vmul.f32 %v508, %v509
    %v511 = vsub.f32 1.0, %v510
    %v512 = vmul.f32 %v509, %v511
    %v513 = vadd.f32 %v509, %v512
    %vm514 = vweird.f32 %v508
    %vm515 = vweird.f32 %v509
    %vm516 = vmor %vm514, %vm515
    %v517 = vsel %vm516, %v509, %v513
    %v518 = vand.u32 2147483647, %v508
    %vm519 = vcmp.eq.f32.partialorder %v518, 8.507059e+37
    %v520 = vand.u32 %v508, 2147483648
    %v521 = vor.u32 1.1754944e-38, %v520
    %v522 = vsel %vm519, %v521, %v517
    %v523 = vmul.f32 1.0, %v522
    %v524 = vtanh.pop %v484
    %v525 = vxor.u32 %v485, 2147483648
    %v526 = vmul.f32 %v525, 1.442695
    %v527 = vpow.pop %v526
    %v528 = vadd.f32 %v527, 1.0
    %v529 = vrcp.pop %v528
    %v530 = vmul.f32 %v528, %v529
    %v531 = vsub.f32 1.0, %v530
    %v532 = vmul.f32 %v529, %v531
    %v533 = vadd.f32 %v529, %v532
    %vm534 = vweird.f32 %v528
    %vm535 = vweird.f32 %v529
    %vm536 = vmor %vm534, %vm535
    %v537 = vsel %vm536, %v529, %v533
    %v538 = vand.u32 2147483647, %v528
    %vm539 = vcmp.eq.f32.partialorder %v538, 8.507059e+37
    %v540 = vand.u32 %v528, 2147483648
    %v541 = vor.u32 1.1754944e-38, %v540
    %v542 = vsel %vm539, %v541, %v537
    %v543 = vmul.f32 1.0, %v542
    %v544 = vmul.f32 %v523, %v397
    %v545 = vmul.f32 %v504, %v524
    %v546 = vadd.f32 %v544, %v545
    %v547 = vtanh.pop %v546
    %v548 = vmul.f32 %v543, %v547
    %s549 = scalar_lea.vmem [#allocation2], 32
    %v550 = vld [vmem:[%s549] sm:$0xff]
    %v551 = vld [vmem:[%s549 + $0x8] sm:$0xff]
    %v552 = vld [vmem:[%s549 + $0x10] sm:$0xff]
    %v553 = vld [vmem:[%s549 + $0x18] sm:$0xff]
    %554 = vmatpush.msra.mxu0 %v392
    %555 = vmatpush.msra.mxu0 %v388
    %556 = vmatpush.msra.mxu0 %v384
    %557 = vmatpush.msra.mxu0 %v380
    %558 = vmatpush.msra.mxu0 %v376
    %559 = vmatpush.msra.mxu0 %v372
    %560 = vmatpush.msra.mxu0 %v368
    %561 = vmatpush.msra.mxu0 %v364
    %562 = vmatpush.msra.mxu0 %v360
    %563 = vmatpush.msra.mxu0 %v356
    %564 = vmatpush.msra.mxu0 %v352
    %565 = vmatpush.msra.mxu0 %v348
    %566 = vmatpush.msra.mxu0 %v344
    %567 = vmatpush.msra.mxu0 %v340
    %568 = vmatpush.msra.mxu0 %v336
    %569 = vmatpush.msra.mxu0 %v332
    %570 = vmatmul.f32.gmra.mxu0 %v548
    %v571 = vpop.f32.mrf.mxu0
    %v572 = vadd.f32 0.0, %v571
    %573 = vdwg.mxu0
    %574 = vmatpush.msra.mxu0 %v393
    %575 = vmatpush.msra.mxu0 %v389
    %576 = vmatpush.msra.mxu0 %v385
    %577 = vmatpush.msra.mxu0 %v381
    %578 = vmatpush.msra.mxu0 %v377
    %579 = vmatpush.msra.mxu0 %v373
    %580 = vmatpush.msra.mxu0 %v369
    %581 = vmatpush.msra.mxu0 %v365
    %582 = vmatpush.msra.mxu0 %v361
    %583 = vmatpush.msra.mxu0 %v357
    %584 = vmatpush.msra.mxu0 %v353
    %585 = vmatpush.msra.mxu0 %v349
    %586 = vmatpush.msra.mxu0 %v345
    %587 = vmatpush.msra.mxu0 %v341
    %588 = vmatpush.msra.mxu0 %v337
    %589 = vmatpush.msra.mxu0 %v333
    %590 = vmatmul.f32.gmra.mxu0 %v548
    %v591 = vpop.f32.mrf.mxu0
    %v592 = vadd.f32 0.0, %v591
    %593 = vdwg.mxu0
    %594 = vmatpush.msra.mxu0 %v394
    %595 = vmatpush.msra.mxu0 %v390
    %596 = vmatpush.msra.mxu0 %v386
    %597 = vmatpush.msra.mxu0 %v382
    %598 = vmatpush.msra.mxu0 %v378
    %599 = vmatpush.msra.mxu0 %v374
    %600 = vmatpush.msra.mxu0 %v370
    %601 = vmatpush.msra.mxu0 %v366
    %602 = vmatpush.msra.mxu0 %v362
    %603 = vmatpush.msra.mxu0 %v358
    %604 = vmatpush.msra.mxu0 %v354
    %605 = vmatpush.msra.mxu0 %v350
    %606 = vmatpush.msra.mxu0 %v346
    %607 = vmatpush.msra.mxu0 %v342
    %608 = vmatpush.msra.mxu0 %v338
    %609 = vmatpush.msra.mxu0 %v334
    %610 = vmatmul.f32.gmra.mxu0 %v548
    %v611 = vpop.f32.mrf.mxu0
    %v612 = vadd.f32 0.0, %v611
    %613 = vdwg.mxu0
    %614 = vmatpush.msra.mxu0 %v395
    %615 = vmatpush.msra.mxu0 %v391
    %616 = vmatpush.msra.mxu0 %v387
    %617 = vmatpush.msra.mxu0 %v383
    %618 = vmatpush.msra.mxu0 %v379
    %619 = vmatpush.msra.mxu0 %v375
    %620 = vmatpush.msra.mxu0 %v371
    %621 = vmatpush.msra.mxu0 %v367
    %622 = vmatpush.msra.mxu0 %v363
    %623 = vmatpush.msra.mxu0 %v359
    %624 = vmatpush.msra.mxu0 %v355
    %625 = vmatpush.msra.mxu0 %v351
    %626 = vmatpush.msra.mxu0 %v347
    %627 = vmatpush.msra.mxu0 %v343
    %628 = vmatpush.msra.mxu0 %v339
    %629 = vmatpush.msra.mxu0 %v335
    %630 = vmatmul.f32.gmra.mxu0 %v548
    %v631 = vpop.f32.mrf.mxu0
    %v632 = vadd.f32 0.0, %v631
    %633 = vdwg.mxu0
    %v634 = vadd.f32 %v550, %v572
    %v635 = vadd.f32 %v551, %v592
    %v636 = vadd.f32 %v552, %v612
    %v637 = vadd.f32 %v553, %v632
    %v638 = vxor.u32 %v634, 2147483648
    %v639 = vmul.f32 %v638, 1.442695
    %v640 = vpow.pop %v639
    %v641 = vadd.f32 %v640, 1.0
    %v642 = vrcp.pop %v641
    %v643 = vmul.f32 %v641, %v642
    %v644 = vsub.f32 1.0, %v643
    %v645 = vmul.f32 %v642, %v644
    %v646 = vadd.f32 %v642, %v645
    %vm647 = vweird.f32 %v641
    %vm648 = vweird.f32 %v642
    %vm649 = vmor %vm647, %vm648
    %v650 = vsel %vm649, %v642, %v646
    %v651 = vand.u32 2147483647, %v641
    %vm652 = vcmp.eq.f32.partialorder %v651, 8.507059e+37
    %v653 = vand.u32 %v641, 2147483648
    %v654 = vor.u32 1.1754944e-38, %v653
    %v655 = vsel %vm652, %v654, %v650
    %v656 = vmul.f32 1.0, %v655
    %v657 = vxor.u32 %v635, 2147483648
    %v658 = vmul.f32 %v657, 1.442695
    %v659 = vpow.pop %v658
    %v660 = vadd.f32 %v659, 1.0
    %v661 = vrcp.pop %v660
    %v662 = vmul.f32 %v660, %v661
    %v663 = vsub.f32 1.0, %v662
    %v664 = vmul.f32 %v661, %v663
    %v665 = vadd.f32 %v661, %v664
    %vm666 = vweird.f32 %v660
    %vm667 = vweird.f32 %v661
    %vm668 = vmor %vm666, %vm667
    %v669 = vsel %vm668, %v661, %v665
    %v670 = vand.u32 2147483647, %v660
    %vm671 = vcmp.eq.f32.partialorder %v670, 8.507059e+37
    %v672 = vand.u32 %v660, 2147483648
    %v673 = vor.u32 1.1754944e-38, %v672
    %v674 = vsel %vm671, %v673, %v669
    %v675 = vmul.f32 1.0, %v674
    %v676 = vtanh.pop %v636
    %v677 = vxor.u32 %v637, 2147483648
    %v678 = vmul.f32 %v677, 1.442695
    %v679 = vpow.pop %v678
    %v680 = vadd.f32 %v679, 1.0
    %v681 = vrcp.pop %v680
    %v682 = vmul.f32 %v680, %v681
    %v683 = vsub.f32 1.0, %v682
    %v684 = vmul.f32 %v681, %v683
    %v685 = vadd.f32 %v681, %v684
    %vm686 = vweird.f32 %v680
    %vm687 = vweird.f32 %v681
    %vm688 = vmor %vm686, %vm687
    %v689 = vsel %vm688, %v681, %v685
    %v690 = vand.u32 2147483647, %v680
    %vm691 = vcmp.eq.f32.partialorder %v690, 8.507059e+37
    %v692 = vand.u32 %v680, 2147483648
    %v693 = vor.u32 1.1754944e-38, %v692
    %v694 = vsel %vm691, %v693, %v689
    %v695 = vmul.f32 1.0, %v694
    %v696 = vmul.f32 %v675, %v546
    %v697 = vmul.f32 %v656, %v676
    %v698 = vadd.f32 %v696, %v697
    %v699 = vtanh.pop %v698
    %v700 = vmul.f32 %v695, %v699
    %s701 = scalar_lea.vmem [#allocation2], 64
    %v702 = vld [vmem:[%s701] sm:$0xff]
    %v703 = vld [vmem:[%s701 + $0x8] sm:$0xff]
    %v704 = vld [vmem:[%s701 + $0x10] sm:$0xff]
    %v705 = vld [vmem:[%s701 + $0x18] sm:$0xff]
    %706 = vmatpush.msra.mxu0 %v392
    %707 = vmatpush.msra.mxu0 %v388
    %708 = vmatpush.msra.mxu0 %v384
    %709 = vmatpush.msra.mxu0 %v380
    %710 = vmatpush.msra.mxu0 %v376
    %711 = vmatpush.msra.mxu0 %v372
    %712 = vmatpush.msra.mxu0 %v368
    %713 = vmatpush.msra.mxu0 %v364
    %714 = vmatpush.msra.mxu0 %v360
    %715 = vmatpush.msra.mxu0 %v356
    %716 = vmatpush.msra.mxu0 %v352
    %717 = vmatpush.msra.mxu0 %v348
    %718 = vmatpush.msra.mxu0 %v344
    %719 = vmatpush.msra.mxu0 %v340
    %720 = vmatpush.msra.mxu0 %v336
    %721 = vmatpush.msra.mxu0 %v332
    %722 = vmatmul.f32.gmra.mxu0 %v700
    %v723 = vpop.f32.mrf.mxu0
    %v724 = vadd.f32 0.0, %v723
    %725 = vdwg.mxu0
    %726 = vmatpush.msra.mxu0 %v393
    %727 = vmatpush.msra.mxu0 %v389
    %728 = vmatpush.msra.mxu0 %v385
    %729 = vmatpush.msra.mxu0 %v381
    %730 = vmatpush.msra.mxu0 %v377
    %731 = vmatpush.msra.mxu0 %v373
    %732 = vmatpush.msra.mxu0 %v369
    %733 = vmatpush.msra.mxu0 %v365
    %734 = vmatpush.msra.mxu0 %v361
    %735 = vmatpush.msra.mxu0 %v357
    %736 = vmatpush.msra.mxu0 %v353
    %737 = vmatpush.msra.mxu0 %v349
    %738 = vmatpush.msra.mxu0 %v345
    %739 = vmatpush.msra.mxu0 %v341
    %740 = vmatpush.msra.mxu0 %v337
    %741 = vmatpush.msra.mxu0 %v333
    %742 = vmatmul.f32.gmra.mxu0 %v700
    %v743 = vpop.f32.mrf.mxu0
    %v744 = vadd.f32 0.0, %v743
    %745 = vdwg.mxu0
    %746 = vmatpush.msra.mxu0 %v394
    %747 = vmatpush.msra.mxu0 %v390
    %748 = vmatpush.msra.mxu0 %v386
    %749 = vmatpush.msra.mxu0 %v382
    %750 = vmatpush.msra.mxu0 %v378
    %751 = vmatpush.msra.mxu0 %v374
    %752 = vmatpush.msra.mxu0 %v370
    %753 = vmatpush.msra.mxu0 %v366
    %754 = vmatpush.msra.mxu0 %v362
    %755 = vmatpush.msra.mxu0 %v358
    %756 = vmatpush.msra.mxu0 %v354
    %757 = vmatpush.msra.mxu0 %v350
    %758 = vmatpush.msra.mxu0 %v346
    %759 = vmatpush.msra.mxu0 %v342
    %760 = vmatpush.msra.mxu0 %v338
    %761 = vmatpush.msra.mxu0 %v334
    %762 = vmatmul.f32.gmra.mxu0 %v700
    %v763 = vpop.f32.mrf.mxu0
    %v764 = vadd.f32 0.0, %v763
    %765 = vdwg.mxu0
    %766 = vmatpush.msra.mxu0 %v395
    %767 = vmatpush.msra.mxu0 %v391
    %768 = vmatpush.msra.mxu0 %v387
    %769 = vmatpush.msra.mxu0 %v383
    %770 = vmatpush.msra.mxu0 %v379
    %771 = vmatpush.msra.mxu0 %v375
    %772 = vmatpush.msra.mxu0 %v371
    %773 = vmatpush.msra.mxu0 %v367
    %774 = vmatpush.msra.mxu0 %v363
    %775 = vmatpush.msra.mxu0 %v359
    %776 = vmatpush.msra.mxu0 %v355
    %777 = vmatpush.msra.mxu0 %v351
    %778 = vmatpush.msra.mxu0 %v347
    %779 = vmatpush.msra.mxu0 %v343
    %780 = vmatpush.msra.mxu0 %v339
    %781 = vmatpush.msra.mxu0 %v335
    %782 = vmatmul.f32.gmra.mxu0 %v700
    %v783 = vpop.f32.mrf.mxu0
    %v784 = vadd.f32 0.0, %v783
    %785 = vdwg.mxu0
    %v786 = vadd.f32 %v702, %v724
    %v787 = vadd.f32 %v703, %v744
    %v788 = vadd.f32 %v704, %v764
    %v789 = vadd.f32 %v705, %v784
    %v790 = vxor.u32 %v786, 2147483648
    %v791 = vmul.f32 %v790, 1.442695
    %v792 = vpow.pop %v791
    %v793 = vadd.f32 %v792, 1.0
    %v794 = vrcp.pop %v793
    %v795 = vmul.f32 %v793, %v794
    %v796 = vsub.f32 1.0, %v795
    %v797 = vmul.f32 %v794, %v796
    %v798 = vadd.f32 %v794, %v797
    %vm799 = vweird.f32 %v793
    %vm800 = vweird.f32 %v794
    %vm801 = vmor %vm799, %vm800
    %v802 = vsel %vm801, %v794, %v798
    %v803 = vand.u32 2147483647, %v793
    %vm804 = vcmp.eq.f32.partialorder %v803, 8.507059e+37
    %v805 = vand.u32 %v793, 2147483648
    %v806 = vor.u32 1.1754944e-38, %v805
    %v807 = vsel %vm804, %v806, %v802
    %v808 = vmul.f32 1.0, %v807
    %v809 = vxor.u32 %v787, 2147483648
    %v810 = vmul.f32 %v809, 1.442695
    %v811 = vpow.pop %v810
    %v812 = vadd.f32 %v811, 1.0
    %v813 = vrcp.pop %v812
    %v814 = vmul.f32 %v812, %v813
    %v815 = vsub.f32 1.0, %v814
    %v816 = vmul.f32 %v813, %v815
    %v817 = vadd.f32 %v813, %v816
    %vm818 = vweird.f32 %v812
    %vm819 = vweird.f32 %v813
    %vm820 = vmor %vm818, %vm819
    %v821 = vsel %vm820, %v813, %v817
    %v822 = vand.u32 2147483647, %v812
    %vm823 = vcmp.eq.f32.partialorder %v822, 8.507059e+37
    %v824 = vand.u32 %v812, 2147483648
    %v825 = vor.u32 1.1754944e-38, %v824
    %v826 = vsel %vm823, %v825, %v821
    %v827 = vmul.f32 1.0, %v826
    %v828 = vtanh.pop %v788
    %v829 = vxor.u32 %v789, 2147483648
    %v830 = vmul.f32 %v829, 1.442695
    %v831 = vpow.pop %v830
    %v832 = vadd.f32 %v831, 1.0
    %v833 = vrcp.pop %v832
    %v834 = vmul.f32 %v832, %v833
    %v835 = vsub.f32 1.0, %v834
    %v836 = vmul.f32 %v833, %v835
    %v837 = vadd.f32 %v833, %v836
    %vm838 = vweird.f32 %v832
    %vm839 = vweird.f32 %v833
    %vm840 = vmor %vm838, %vm839
    %v841 = vsel %vm840, %v833, %v837
    %v842 = vand.u32 2147483647, %v832
    %vm843 = vcmp.eq.f32.partialorder %v842, 8.507059e+37
    %v844 = vand.u32 %v832, 2147483648
    %v845 = vor.u32 1.1754944e-38, %v844
    %v846 = vsel %vm843, %v845, %v841
    %v847 = vmul.f32 1.0, %v846
    %v848 = vmul.f32 %v827, %v698
    %v849 = vmul.f32 %v808, %v828
    %v850 = vadd.f32 %v848, %v849
    %v851 = vtanh.pop %v850
    %v852 = vmul.f32 %v847, %v851
    %s853 = scalar_lea.vmem [#allocation2], 96
    %v854 = vld [vmem:[%s853] sm:$0xff]
    %v855 = vld [vmem:[%s853 + $0x8] sm:$0xff]
    %v856 = vld [vmem:[%s853 + $0x10] sm:$0xff]
    %v857 = vld [vmem:[%s853 + $0x18] sm:$0xff]
    %858 = vmatpush.msra.mxu0 %v392
    %859 = vmatpush.msra.mxu0 %v388
    %860 = vmatpush.msra.mxu0 %v384
    %861 = vmatpush.msra.mxu0 %v380
    %862 = vmatpush.msra.mxu0 %v376
    %863 = vmatpush.msra.mxu0 %v372
    %864 = vmatpush.msra.mxu0 %v368
    %865 = vmatpush.msra.mxu0 %v364
    %866 = vmatpush.msra.mxu0 %v360
    %867 = vmatpush.msra.mxu0 %v356
    %868 = vmatpush.msra.mxu0 %v352
    %869 = vmatpush.msra.mxu0 %v348
    %870 = vmatpush.msra.mxu0 %v344
    %871 = vmatpush.msra.mxu0 %v340
    %872 = vmatpush.msra.mxu0 %v336
    %873 = vmatpush.msra.mxu0 %v332
    %874 = vmatmul.f32.gmra.mxu0 %v852
    %v875 = vpop.f32.mrf.mxu0
    %v876 = vadd.f32 0.0, %v875
    %877 = vdwg.mxu0
    %878 = vmatpush.msra.mxu0 %v393
    %879 = vmatpush.msra.mxu0 %v389
    %880 = vmatpush.msra.mxu0 %v385
    %881 = vmatpush.msra.mxu0 %v381
    %882 = vmatpush.msra.mxu0 %v377
    %883 = vmatpush.msra.mxu0 %v373
    %884 = vmatpush.msra.mxu0 %v369
    %885 = vmatpush.msra.mxu0 %v365
    %886 = vmatpush.msra.mxu0 %v361
    %887 = vmatpush.msra.mxu0 %v357
    %888 = vmatpush.msra.mxu0 %v353
    %889 = vmatpush.msra.mxu0 %v349
    %890 = vmatpush.msra.mxu0 %v345
    %891 = vmatpush.msra.mxu0 %v341
    %892 = vmatpush.msra.mxu0 %v337
    %893 = vmatpush.msra.mxu0 %v333
    %894 = vmatmul.f32.gmra.mxu0 %v852
    %v895 = vpop.f32.mrf.mxu0
    %v896 = vadd.f32 0.0, %v895
    %897 = vdwg.mxu0
    %898 = vmatpush.msra.mxu0 %v394
    %899 = vmatpush.msra.mxu0 %v390
    %900 = vmatpush.msra.mxu0 %v386
    %901 = vmatpush.msra.mxu0 %v382
    %902 = vmatpush.msra.mxu0 %v378
    %903 = vmatpush.msra.mxu0 %v374
    %904 = vmatpush.msra.mxu0 %v370
    %905 = vmatpush.msra.mxu0 %v366
    %906 = vmatpush.msra.mxu0 %v362
    %907 = vmatpush.msra.mxu0 %v358
    %908 = vmatpush.msra.mxu0 %v354
    %909 = vmatpush.msra.mxu0 %v350
    %910 = vmatpush.msra.mxu0 %v346
    %911 = vmatpush.msra.mxu0 %v342
    %912 = vmatpush.msra.mxu0 %v338
    %913 = vmatpush.msra.mxu0 %v334
    %914 = vmatmul.f32.gmra.mxu0 %v852
    %v915 = vpop.f32.mrf.mxu0
    %v916 = vadd.f32 0.0, %v915
    %917 = vdwg.mxu0
    %918 = vmatpush.msra.mxu0 %v395
    %919 = vmatpush.msra.mxu0 %v391
    %920 = vmatpush.msra.mxu0 %v387
    %921 = vmatpush.msra.mxu0 %v383
    %922 = vmatpush.msra.mxu0 %v379
    %923 = vmatpush.msra.mxu0 %v375
    %924 = vmatpush.msra.mxu0 %v371
    %925 = vmatpush.msra.mxu0 %v367
    %926 = vmatpush.msra.mxu0 %v363
    %927 = vmatpush.msra.mxu0 %v359
    %928 = vmatpush.msra.mxu0 %v355
    %929 = vmatpush.msra.mxu0 %v351
    %930 = vmatpush.msra.mxu0 %v347
    %931 = vmatpush.msra.mxu0 %v343
    %932 = vmatpush.msra.mxu0 %v339
    %933 = vmatpush.msra.mxu0 %v335
    %934 = vmatmul.f32.gmra.mxu0 %v852
    %v935 = vpop.f32.mrf.mxu0
    %v936 = vadd.f32 0.0, %v935
    %937 = vdwg.mxu0
    %v938 = vadd.f32 %v854, %v876
    %v939 = vadd.f32 %v855, %v896
    %v940 = vadd.f32 %v856, %v916
    %v941 = vadd.f32 %v857, %v936
    %v942 = vxor.u32 %v938, 2147483648
    %v943 = vmul.f32 %v942, 1.442695
    %v944 = vpow.pop %v943
    %v945 = vadd.f32 %v944, 1.0
    %v946 = vrcp.pop %v945
    %v947 = vmul.f32 %v945, %v946
    %v948 = vsub.f32 1.0, %v947
    %v949 = vmul.f32 %v946, %v948
    %v950 = vadd.f32 %v946, %v949
    %vm951 = vweird.f32 %v945
    %vm952 = vweird.f32 %v946
    %vm953 = vmor %vm951, %vm952
    %v954 = vsel %vm953, %v946, %v950
    %v955 = vand.u32 2147483647, %v945
    %vm956 = vcmp.eq.f32.partialorder %v955, 8.507059e+37
    %v957 = vand.u32 %v945, 2147483648
    %v958 = vor.u32 1.1754944e-38, %v957
    %v959 = vsel %vm956, %v958, %v954
    %v960 = vmul.f32 1.0, %v959
    %v961 = vxor.u32 %v939, 2147483648
    %v962 = vmul.f32 %v961, 1.442695
    %v963 = vpow.pop %v962
    %v964 = vadd.f32 %v963, 1.0
    %v965 = vrcp.pop %v964
    %v966 = vmul.f32 %v964, %v965
    %v967 = vsub.f32 1.0, %v966
    %v968 = vmul.f32 %v965, %v967
    %v969 = vadd.f32 %v965, %v968
    %vm970 = vweird.f32 %v964
    %vm971 = vweird.f32 %v965
    %vm972 = vmor %vm970, %vm971
    %v973 = vsel %vm972, %v965, %v969
    %v974 = vand.u32 2147483647, %v964
    %vm975 = vcmp.eq.f32.partialorder %v974, 8.507059e+37
    %v976 = vand.u32 %v964, 2147483648
    %v977 = vor.u32 1.1754944e-38, %v976
    %v978 = vsel %vm975, %v977, %v973
    %v979 = vmul.f32 1.0, %v978
    %v980 = vtanh.pop %v940
    %v981 = vxor.u32 %v941, 2147483648
    %v982 = vmul.f32 %v981, 1.442695
    %v983 = vpow.pop %v982
    %v984 = vadd.f32 %v983, 1.0
    %v985 = vrcp.pop %v984
    %v986 = vmul.f32 %v984, %v985
    %v987 = vsub.f32 1.0, %v986
    %v988 = vmul.f32 %v985, %v987
    %v989 = vadd.f32 %v985, %v988
    %vm990 = vweird.f32 %v984
    %vm991 = vweird.f32 %v985
    %vm992 = vmor %vm990, %vm991
    %v993 = vsel %vm992, %v985, %v989
    %v994 = vand.u32 2147483647, %v984
    %vm995 = vcmp.eq.f32.partialorder %v994, 8.507059e+37
    %v996 = vand.u32 %v984, 2147483648
    %v997 = vor.u32 1.1754944e-38, %v996
    %v998 = vsel %vm995, %v997, %v993
    %v999 = vmul.f32 1.0, %v998
    %v1000 = vmul.f32 %v979, %v850
    %v1001 = vmul.f32 %v960, %v980
    %v1002 = vadd.f32 %v1000, %v1001
    %v1003 = vtanh.pop %v1002
    %v1004 = vmul.f32 %v999, %v1003
    %s1005 = scalar_lea.vmem [#allocation2], 128
    %v1006 = vld [vmem:[%s1005] sm:$0xff]
    %v1007 = vld [vmem:[%s1005 + $0x8] sm:$0xff]
    %v1008 = vld [vmem:[%s1005 + $0x10] sm:$0xff]
    %v1009 = vld [vmem:[%s1005 + $0x18] sm:$0xff]
    %1010 = vmatpush.msra.mxu0 %v392
    %1011 = vmatpush.msra.mxu0 %v388
    %1012 = vmatpush.msra.mxu0 %v384
    %1013 = vmatpush.msra.mxu0 %v380
    %1014 = vmatpush.msra.mxu0 %v376
    %1015 = vmatpush.msra.mxu0 %v372
    %1016 = vmatpush.msra.mxu0 %v368
    %1017 = vmatpush.msra.mxu0 %v364
    %1018 = vmatpush.msra.mxu0 %v360
    %1019 = vmatpush.msra.mxu0 %v356
    %1020 = vmatpush.msra.mxu0 %v352
    %1021 = vmatpush.msra.mxu0 %v348
    %1022 = vmatpush.msra.mxu0 %v344
    %1023 = vmatpush.msra.mxu0 %v340
    %1024 = vmatpush.msra.mxu0 %v336
    %1025 = vmatpush.msra.mxu0 %v332
    %1026 = vmatmul.f32.gmra.mxu0 %v1004
    %v1027 = vpop.f32.mrf.mxu0
    %v1028 = vadd.f32 0.0, %v1027
    %1029 = vdwg.mxu0
    %1030 = vmatpush.msra.mxu0 %v393
    %1031 = vmatpush.msra.mxu0 %v389
    %1032 = vmatpush.msra.mxu0 %v385
    %1033 = vmatpush.msra.mxu0 %v381
    %1034 = vmatpush.msra.mxu0 %v377
    %1035 = vmatpush.msra.mxu0 %v373
    %1036 = vmatpush.msra.mxu0 %v369
    %1037 = vmatpush.msra.mxu0 %v365
    %1038 = vmatpush.msra.mxu0 %v361
    %1039 = vmatpush.msra.mxu0 %v357
    %1040 = vmatpush.msra.mxu0 %v353
    %1041 = vmatpush.msra.mxu0 %v349
    %1042 = vmatpush.msra.mxu0 %v345
    %1043 = vmatpush.msra.mxu0 %v341
    %1044 = vmatpush.msra.mxu0 %v337
    %1045 = vmatpush.msra.mxu0 %v333
    %1046 = vmatmul.f32.gmra.mxu0 %v1004
    %v1047 = vpop.f32.mrf.mxu0
    %v1048 = vadd.f32 0.0, %v1047
    %1049 = vdwg.mxu0
    %1050 = vmatpush.msra.mxu0 %v394
    %1051 = vmatpush.msra.mxu0 %v390
    %1052 = vmatpush.msra.mxu0 %v386
    %1053 = vmatpush.msra.mxu0 %v382
    %1054 = vmatpush.msra.mxu0 %v378
    %1055 = vmatpush.msra.mxu0 %v374
    %1056 = vmatpush.msra.mxu0 %v370
    %1057 = vmatpush.msra.mxu0 %v366
    %1058 = vmatpush.msra.mxu0 %v362
    %1059 = vmatpush.msra.mxu0 %v358
    %1060 = vmatpush.msra.mxu0 %v354
    %1061 = vmatpush.msra.mxu0 %v350
    %1062 = vmatpush.msra.mxu0 %v346
    %1063 = vmatpush.msra.mxu0 %v342
    %1064 = vmatpush.msra.mxu0 %v338
    %1065 = vmatpush.msra.mxu0 %v334
    %1066 = vmatmul.f32.gmra.mxu0 %v1004
    %v1067 = vpop.f32.mrf.mxu0
    %v1068 = vadd.f32 0.0, %v1067
    %1069 = vdwg.mxu0
    %1070 = vmatpush.msra.mxu0 %v395
    %1071 = vmatpush.msra.mxu0 %v391
    %1072 = vmatpush.msra.mxu0 %v387
    %1073 = vmatpush.msra.mxu0 %v383
    %1074 = vmatpush.msra.mxu0 %v379
    %1075 = vmatpush.msra.mxu0 %v375
    %1076 = vmatpush.msra.mxu0 %v371
    %1077 = vmatpush.msra.mxu0 %v367
    %1078 = vmatpush.msra.mxu0 %v363
    %1079 = vmatpush.msra.mxu0 %v359
    %1080 = vmatpush.msra.mxu0 %v355
    %1081 = vmatpush.msra.mxu0 %v351
    %1082 = vmatpush.msra.mxu0 %v347
    %1083 = vmatpush.msra.mxu0 %v343
    %1084 = vmatpush.msra.mxu0 %v339
    %1085 = vmatpush.msra.mxu0 %v335
    %1086 = vmatmul.f32.gmra.mxu0 %v1004
    %v1087 = vpop.f32.mrf.mxu0
    %v1088 = vadd.f32 0.0, %v1087
    %1089 = vdwg.mxu0
    %v1090 = vadd.f32 %v1006, %v1028
    %v1091 = vadd.f32 %v1007, %v1048
    %v1092 = vadd.f32 %v1008, %v1068
    %v1093 = vadd.f32 %v1009, %v1088
    %v1094 = vxor.u32 %v1090, 2147483648
    %v1095 = vmul.f32 %v1094, 1.442695
    %v1096 = vpow.pop %v1095
    %v1097 = vadd.f32 %v1096, 1.0
    %v1098 = vrcp.pop %v1097
    %v1099 = vmul.f32 %v1097, %v1098
    %v1100 = vsub.f32 1.0, %v1099
    %v1101 = vmul.f32 %v1098, %v1100
    %v1102 = vadd.f32 %v1098, %v1101
    %vm1103 = vweird.f32 %v1097
    %vm1104 = vweird.f32 %v1098
    %vm1105 = vmor %vm1103, %vm1104
    %v1106 = vsel %vm1105, %v1098, %v1102
    %v1107 = vand.u32 2147483647, %v1097
    %vm1108 = vcmp.eq.f32.partialorder %v1107, 8.507059e+37
    %v1109 = vand.u32 %v1097, 2147483648
    %v1110 = vor.u32 1.1754944e-38, %v1109
    %v1111 = vsel %vm1108, %v1110, %v1106
    %v1112 = vmul.f32 1.0, %v1111
    %v1113 = vxor.u32 %v1091, 2147483648
    %v1114 = vmul.f32 %v1113, 1.442695
    %v1115 = vpow.pop %v1114
    %v1116 = vadd.f32 %v1115, 1.0
    %v1117 = vrcp.pop %v1116
    %v1118 = vmul.f32 %v1116, %v1117
    %v1119 = vsub.f32 1.0, %v1118
    %v1120 = vmul.f32 %v1117, %v1119
    %v1121 = vadd.f32 %v1117, %v1120
    %vm1122 = vweird.f32 %v1116
    %vm1123 = vweird.f32 %v1117
    %vm1124 = vmor %vm1122, %vm1123
    %v1125 = vsel %vm1124, %v1117, %v1121
    %v1126 = vand.u32 2147483647, %v1116
    %vm1127 = vcmp.eq.f32.partialorder %v1126, 8.507059e+37
    %v1128 = vand.u32 %v1116, 2147483648
    %v1129 = vor.u32 1.1754944e-38, %v1128
    %v1130 = vsel %vm1127, %v1129, %v1125
    %v1131 = vmul.f32 1.0, %v1130
    %v1132 = vtanh.pop %v1092
    %v1133 = vxor.u32 %v1093, 2147483648
    %v1134 = vmul.f32 %v1133, 1.442695
    %v1135 = vpow.pop %v1134
    %v1136 = vadd.f32 %v1135, 1.0
    %v1137 = vrcp.pop %v1136
    %v1138 = vmul.f32 %v1136, %v1137
    %v1139 = vsub.f32 1.0, %v1138
    %v1140 = vmul.f32 %v1137, %v1139
    %v1141 = vadd.f32 %v1137, %v1140
    %vm1142 = vweird.f32 %v1136
    %vm1143 = vweird.f32 %v1137
    %vm1144 = vmor %vm1142, %vm1143
    %v1145 = vsel %vm1144, %v1137, %v1141
    %v1146 = vand.u32 2147483647, %v1136
    %vm1147 = vcmp.eq.f32.partialorder %v1146, 8.507059e+37
    %v1148 = vand.u32 %v1136, 2147483648
    %v1149 = vor.u32 1.1754944e-38, %v1148
    %v1150 = vsel %vm1147, %v1149, %v1145
    %v1151 = vmul.f32 1.0, %v1150
    %v1152 = vmul.f32 %v1131, %v1002
    %v1153 = vmul.f32 %v1112, %v1132
    %v1154 = vadd.f32 %v1152, %v1153
    %v1155 = vtanh.pop %v1154
    %v1156 = vmul.f32 %v1151, %v1155
    %s1157 = scalar_lea.vmem [#allocation2], 160
    %v1158 = vld [vmem:[%s1157] sm:$0xff]
    %v1159 = vld [vmem:[%s1157 + $0x8] sm:$0xff]
    %v1160 = vld [vmem:[%s1157 + $0x10] sm:$0xff]
    %v1161 = vld [vmem:[%s1157 + $0x18] sm:$0xff]
    %1162 = vmatpush.msra.mxu0 %v392
    %1163 = vmatpush.msra.mxu0 %v388
    %1164 = vmatpush.msra.mxu0 %v384
    %1165 = vmatpush.msra.mxu0 %v380
    %1166 = vmatpush.msra.mxu0 %v376
    %1167 = vmatpush.msra.mxu0 %v372
    %1168 = vmatpush.msra.mxu0 %v368
    %1169 = vmatpush.msra.mxu0 %v364
    %1170 = vmatpush.msra.mxu0 %v360
    %1171 = vmatpush.msra.mxu0 %v356
    %1172 = vmatpush.msra.mxu0 %v352
    %1173 = vmatpush.msra.mxu0 %v348
    %1174 = vmatpush.msra.mxu0 %v344
    %1175 = vmatpush.msra.mxu0 %v340
    %1176 = vmatpush.msra.mxu0 %v336
    %1177 = vmatpush.msra.mxu0 %v332
    %1178 = vmatmul.f32.gmra.mxu0 %v1156
    %v1179 = vpop.f32.mrf.mxu0
    %v1180 = vadd.f32 0.0, %v1179
    %1181 = vdwg.mxu0
    %1182 = vmatpush.msra.mxu0 %v393
    %1183 = vmatpush.msra.mxu0 %v389
    %1184 = vmatpush.msra.mxu0 %v385
    %1185 = vmatpush.msra.mxu0 %v381
    %1186 = vmatpush.msra.mxu0 %v377
    %1187 = vmatpush.msra.mxu0 %v373
    %1188 = vmatpush.msra.mxu0 %v369
    %1189 = vmatpush.msra.mxu0 %v365
    %1190 = vmatpush.msra.mxu0 %v361
    %1191 = vmatpush.msra.mxu0 %v357
    %1192 = vmatpush.msra.mxu0 %v353
    %1193 = vmatpush.msra.mxu0 %v349
    %1194 = vmatpush.msra.mxu0 %v345
    %1195 = vmatpush.msra.mxu0 %v341
    %1196 = vmatpush.msra.mxu0 %v337
    %1197 = vmatpush.msra.mxu0 %v333
    %1198 = vmatmul.f32.gmra.mxu0 %v1156
    %v1199 = vpop.f32.mrf.mxu0
    %v1200 = vadd.f32 0.0, %v1199
    %1201 = vdwg.mxu0
    %1202 = vmatpush.msra.mxu0 %v394
    %1203 = vmatpush.msra.mxu0 %v390
    %1204 = vmatpush.msra.mxu0 %v386
    %1205 = vmatpush.msra.mxu0 %v382
    %1206 = vmatpush.msra.mxu0 %v378
    %1207 = vmatpush.msra.mxu0 %v374
    %1208 = vmatpush.msra.mxu0 %v370
    %1209 = vmatpush.msra.mxu0 %v366
    %1210 = vmatpush.msra.mxu0 %v362
    %1211 = vmatpush.msra.mxu0 %v358
    %1212 = vmatpush.msra.mxu0 %v354
    %1213 = vmatpush.msra.mxu0 %v350
    %1214 = vmatpush.msra.mxu0 %v346
    %1215 = vmatpush.msra.mxu0 %v342
    %1216 = vmatpush.msra.mxu0 %v338
    %1217 = vmatpush.msra.mxu0 %v334
    %1218 = vmatmul.f32.gmra.mxu0 %v1156
    %v1219 = vpop.f32.mrf.mxu0
    %v1220 = vadd.f32 0.0, %v1219
    %1221 = vdwg.mxu0
    %1222 = vmatpush.msra.mxu0 %v395
    %1223 = vmatpush.msra.mxu0 %v391
    %1224 = vmatpush.msra.mxu0 %v387
    %1225 = vmatpush.msra.mxu0 %v383
    %1226 = vmatpush.msra.mxu0 %v379
    %1227 = vmatpush.msra.mxu0 %v375
    %1228 = vmatpush.msra.mxu0 %v371
    %1229 = vmatpush.msra.mxu0 %v367
    %1230 = vmatpush.msra.mxu0 %v363
    %1231 = vmatpush.msra.mxu0 %v359
    %1232 = vmatpush.msra.mxu0 %v355
    %1233 = vmatpush.msra.mxu0 %v351
    %1234 = vmatpush.msra.mxu0 %v347
    %1235 = vmatpush.msra.mxu0 %v343
    %1236 = vmatpush.msra.mxu0 %v339
    %1237 = vmatpush.msra.mxu0 %v335
    %1238 = vmatmul.f32.gmra.mxu0 %v1156
    %v1239 = vpop.f32.mrf.mxu0
    %v1240 = vadd.f32 0.0, %v1239
    %1241 = vdwg.mxu0
    %v1242 = vadd.f32 %v1158, %v1180
    %v1243 = vadd.f32 %v1159, %v1200
    %v1244 = vadd.f32 %v1160, %v1220
    %v1245 = vadd.f32 %v1161, %v1240
    %v1246 = vxor.u32 %v1242, 2147483648
    %v1247 = vmul.f32 %v1246, 1.442695
    %v1248 = vpow.pop %v1247
    %v1249 = vadd.f32 %v1248, 1.0
    %v1250 = vrcp.pop %v1249
    %v1251 = vmul.f32 %v1249, %v1250
    %v1252 = vsub.f32 1.0, %v1251
    %v1253 = vmul.f32 %v1250, %v1252
    %v1254 = vadd.f32 %v1250, %v1253
    %vm1255 = vweird.f32 %v1249
    %vm1256 = vweird.f32 %v1250
    %vm1257 = vmor %vm1255, %vm1256
    %v1258 = vsel %vm1257, %v1250, %v1254
    %v1259 = vand.u32 2147483647, %v1249
    %vm1260 = vcmp.eq.f32.partialorder %v1259, 8.507059e+37
    %v1261 = vand.u32 %v1249, 2147483648
    %v1262 = vor.u32 1.1754944e-38, %v1261
    %v1263 = vsel %vm1260, %v1262, %v1258
    %v1264 = vmul.f32 1.0, %v1263
    %v1265 = vxor.u32 %v1243, 2147483648
    %v1266 = vmul.f32 %v1265, 1.442695
    %v1267 = vpow.pop %v1266
    %v1268 = vadd.f32 %v1267, 1.0
    %v1269 = vrcp.pop %v1268
    %v1270 = vmul.f32 %v1268, %v1269
    %v1271 = vsub.f32 1.0, %v1270
    %v1272 = vmul.f32 %v1269, %v1271
    %v1273 = vadd.f32 %v1269, %v1272
    %vm1274 = vweird.f32 %v1268
    %vm1275 = vweird.f32 %v1269
    %vm1276 = vmor %vm1274, %vm1275
    %v1277 = vsel %vm1276, %v1269, %v1273
    %v1278 = vand.u32 2147483647, %v1268
    %vm1279 = vcmp.eq.f32.partialorder %v1278, 8.507059e+37
    %v1280 = vand.u32 %v1268, 2147483648
    %v1281 = vor.u32 1.1754944e-38, %v1280
    %v1282 = vsel %vm1279, %v1281, %v1277
    %v1283 = vmul.f32 1.0, %v1282
    %v1284 = vtanh.pop %v1244
    %v1285 = vxor.u32 %v1245, 2147483648
    %v1286 = vmul.f32 %v1285, 1.442695
    %v1287 = vpow.pop %v1286
    %v1288 = vadd.f32 %v1287, 1.0
    %v1289 = vrcp.pop %v1288
    %v1290 = vmul.f32 %v1288, %v1289
    %v1291 = vsub.f32 1.0, %v1290
    %v1292 = vmul.f32 %v1289, %v1291
    %v1293 = vadd.f32 %v1289, %v1292
    %vm1294 = vweird.f32 %v1288
    %vm1295 = vweird.f32 %v1289
    %vm1296 = vmor %vm1294, %vm1295
    %v1297 = vsel %vm1296, %v1289, %v1293
    %v1298 = vand.u32 2147483647, %v1288
    %vm1299 = vcmp.eq.f32.partialorder %v1298, 8.507059e+37
    %v1300 = vand.u32 %v1288, 2147483648
    %v1301 = vor.u32 1.1754944e-38, %v1300
    %v1302 = vsel %vm1299, %v1301, %v1297
    %v1303 = vmul.f32 1.0, %v1302
    %v1304 = vmul.f32 %v1283, %v1154
    %v1305 = vmul.f32 %v1264, %v1284
    %v1306 = vadd.f32 %v1304, %v1305
    %v1307 = vtanh.pop %v1306
    %v1308 = vmul.f32 %v1303, %v1307
    %s1309 = scalar_lea.vmem [#allocation2], 192
    %v1310 = vld [vmem:[%s1309] sm:$0xff]
    %v1311 = vld [vmem:[%s1309 + $0x8] sm:$0xff]
    %v1312 = vld [vmem:[%s1309 + $0x10] sm:$0xff]
    %v1313 = vld [vmem:[%s1309 + $0x18] sm:$0xff]
    %1314 = vmatpush.msra.mxu0 %v392
    %1315 = vmatpush.msra.mxu0 %v388
    %1316 = vmatpush.msra.mxu0 %v384
    %1317 = vmatpush.msra.mxu0 %v380
    %1318 = vmatpush.msra.mxu0 %v376
    %1319 = vmatpush.msra.mxu0 %v372
    %1320 = vmatpush.msra.mxu0 %v368
    %1321 = vmatpush.msra.mxu0 %v364
    %1322 = vmatpush.msra.mxu0 %v360
    %1323 = vmatpush.msra.mxu0 %v356
    %1324 = vmatpush.msra.mxu0 %v352
    %1325 = vmatpush.msra.mxu0 %v348
    %1326 = vmatpush.msra.mxu0 %v344
    %1327 = vmatpush.msra.mxu0 %v340
    %1328 = vmatpush.msra.mxu0 %v336
    %1329 = vmatpush.msra.mxu0 %v332
    %1330 = vmatmul.f32.gmra.mxu0 %v1308
    %v1331 = vpop.f32.mrf.mxu0
    %v1332 = vadd.f32 0.0, %v1331
    %1333 = vdwg.mxu0
    %1334 = vmatpush.msra.mxu0 %v393
    %1335 = vmatpush.msra.mxu0 %v389
    %1336 = vmatpush.msra.mxu0 %v385
    %1337 = vmatpush.msra.mxu0 %v381
    %1338 = vmatpush.msra.mxu0 %v377
    %1339 = vmatpush.msra.mxu0 %v373
    %1340 = vmatpush.msra.mxu0 %v369
    %1341 = vmatpush.msra.mxu0 %v365
    %1342 = vmatpush.msra.mxu0 %v361
    %1343 = vmatpush.msra.mxu0 %v357
    %1344 = vmatpush.msra.mxu0 %v353
    %1345 = vmatpush.msra.mxu0 %v349
    %1346 = vmatpush.msra.mxu0 %v345
    %1347 = vmatpush.msra.mxu0 %v341
    %1348 = vmatpush.msra.mxu0 %v337
    %1349 = vmatpush.msra.mxu0 %v333
    %1350 = vmatmul.f32.gmra.mxu0 %v1308
    %v1351 = vpop.f32.mrf.mxu0
    %v1352 = vadd.f32 0.0, %v1351
    %1353 = vdwg.mxu0
    %1354 = vmatpush.msra.mxu0 %v394
    %1355 = vmatpush.msra.mxu0 %v390
    %1356 = vmatpush.msra.mxu0 %v386
    %1357 = vmatpush.msra.mxu0 %v382
    %1358 = vmatpush.msra.mxu0 %v378
    %1359 = vmatpush.msra.mxu0 %v374
    %1360 = vmatpush.msra.mxu0 %v370
    %1361 = vmatpush.msra.mxu0 %v366
    %1362 = vmatpush.msra.mxu0 %v362
    %1363 = vmatpush.msra.mxu0 %v358
    %1364 = vmatpush.msra.mxu0 %v354
    %1365 = vmatpush.msra.mxu0 %v350
    %1366 = vmatpush.msra.mxu0 %v346
    %1367 = vmatpush.msra.mxu0 %v342
    %1368 = vmatpush.msra.mxu0 %v338
    %1369 = vmatpush.msra.mxu0 %v334
    %1370 = vmatmul.f32.gmra.mxu0 %v1308
    %v1371 = vpop.f32.mrf.mxu0
    %v1372 = vadd.f32 0.0, %v1371
    %1373 = vdwg.mxu0
    %1374 = vmatpush.msra.mxu0 %v395
    %1375 = vmatpush.msra.mxu0 %v391
    %1376 = vmatpush.msra.mxu0 %v387
    %1377 = vmatpush.msra.mxu0 %v383
    %1378 = vmatpush.msra.mxu0 %v379
    %1379 = vmatpush.msra.mxu0 %v375
    %1380 = vmatpush.msra.mxu0 %v371
    %1381 = vmatpush.msra.mxu0 %v367
    %1382 = vmatpush.msra.mxu0 %v363
    %1383 = vmatpush.msra.mxu0 %v359
    %1384 = vmatpush.msra.mxu0 %v355
    %1385 = vmatpush.msra.mxu0 %v351
    %1386 = vmatpush.msra.mxu0 %v347
    %1387 = vmatpush.msra.mxu0 %v343
    %1388 = vmatpush.msra.mxu0 %v339
    %1389 = vmatpush.msra.mxu0 %v335
    %1390 = vmatmul.f32.gmra.mxu0 %v1308
    %v1391 = vpop.f32.mrf.mxu0
    %v1392 = vadd.f32 0.0, %v1391
    %1393 = vdwg.mxu0
    %v1394 = vadd.f32 %v1310, %v1332
    %v1395 = vadd.f32 %v1311, %v1352
    %v1396 = vadd.f32 %v1312, %v1372
    %v1397 = vadd.f32 %v1313, %v1392
    %v1398 = vxor.u32 %v1394, 2147483648
    %v1399 = vmul.f32 %v1398, 1.442695
    %v1400 = vpow.pop %v1399
    %v1401 = vadd.f32 %v1400, 1.0
    %v1402 = vrcp.pop %v1401
    %v1403 = vmul.f32 %v1401, %v1402
    %v1404 = vsub.f32 1.0, %v1403
    %v1405 = vmul.f32 %v1402, %v1404
    %v1406 = vadd.f32 %v1402, %v1405
    %vm1407 = vweird.f32 %v1401
    %vm1408 = vweird.f32 %v1402
    %vm1409 = vmor %vm1407, %vm1408
    %v1410 = vsel %vm1409, %v1402, %v1406
    %v1411 = vand.u32 2147483647, %v1401
    %vm1412 = vcmp.eq.f32.partialorder %v1411, 8.507059e+37
    %v1413 = vand.u32 %v1401, 2147483648
    %v1414 = vor.u32 1.1754944e-38, %v1413
    %v1415 = vsel %vm1412, %v1414, %v1410
    %v1416 = vmul.f32 1.0, %v1415
    %v1417 = vxor.u32 %v1395, 2147483648
    %v1418 = vmul.f32 %v1417, 1.442695
    %v1419 = vpow.pop %v1418
    %v1420 = vadd.f32 %v1419, 1.0
    %v1421 = vrcp.pop %v1420
    %v1422 = vmul.f32 %v1420, %v1421
    %v1423 = vsub.f32 1.0, %v1422
    %v1424 = vmul.f32 %v1421, %v1423
    %v1425 = vadd.f32 %v1421, %v1424
    %vm1426 = vweird.f32 %v1420
    %vm1427 = vweird.f32 %v1421
    %vm1428 = vmor %vm1426, %vm1427
    %v1429 = vsel %vm1428, %v1421, %v1425
    %v1430 = vand.u32 2147483647, %v1420
    %vm1431 = vcmp.eq.f32.partialorder %v1430, 8.507059e+37
    %v1432 = vand.u32 %v1420, 2147483648
    %v1433 = vor.u32 1.1754944e-38, %v1432
    %v1434 = vsel %vm1431, %v1433, %v1429
    %v1435 = vmul.f32 1.0, %v1434
    %v1436 = vtanh.pop %v1396
    %v1437 = vxor.u32 %v1397, 2147483648
    %v1438 = vmul.f32 %v1437, 1.442695
    %v1439 = vpow.pop %v1438
    %v1440 = vadd.f32 %v1439, 1.0
    %v1441 = vrcp.pop %v1440
    %v1442 = vmul.f32 %v1440, %v1441
    %v1443 = vsub.f32 1.0, %v1442
    %v1444 = vmul.f32 %v1441, %v1443
    %v1445 = vadd.f32 %v1441, %v1444
    %vm1446 = vweird.f32 %v1440
    %vm1447 = vweird.f32 %v1441
    %vm1448 = vmor %vm1446, %vm1447
    %v1449 = vsel %vm1448, %v1441, %v1445
    %v1450 = vand.u32 2147483647, %v1440
    %vm1451 = vcmp.eq.f32.partialorder %v1450, 8.507059e+37
    %v1452 = vand.u32 %v1440, 2147483648
    %v1453 = vor.u32 1.1754944e-38, %v1452
    %v1454 = vsel %vm1451, %v1453, %v1449
    %v1455 = vmul.f32 1.0, %v1454
    %v1456 = vmul.f32 %v1435, %v1306
    %v1457 = vmul.f32 %v1416, %v1436
    %v1458 = vadd.f32 %v1456, %v1457
    %v1459 = vtanh.pop %v1458
    %v1460 = vmul.f32 %v1455, %v1459
    %s1461 = scalar_lea.vmem [#allocation2], 224
    %v1462 = vld [vmem:[%s1461] sm:$0xff]
    %v1463 = vld [vmem:[%s1461 + $0x8] sm:$0xff]
    %v1464 = vld [vmem:[%s1461 + $0x10] sm:$0xff]
    %v1465 = vld [vmem:[%s1461 + $0x18] sm:$0xff]
    %1466 = vmatpush.msra.mxu0 %v392
    %1467 = vmatpush.msra.mxu0 %v388
    %1468 = vmatpush.msra.mxu0 %v384
    %1469 = vmatpush.msra.mxu0 %v380
    %1470 = vmatpush.msra.mxu0 %v376
    %1471 = vmatpush.msra.mxu0 %v372
    %1472 = vmatpush.msra.mxu0 %v368
    %1473 = vmatpush.msra.mxu0 %v364
    %1474 = vmatpush.msra.mxu0 %v360
    %1475 = vmatpush.msra.mxu0 %v356
    %1476 = vmatpush.msra.mxu0 %v352
    %1477 = vmatpush.msra.mxu0 %v348
    %1478 = vmatpush.msra.mxu0 %v344
    %1479 = vmatpush.msra.mxu0 %v340
    %1480 = vmatpush.msra.mxu0 %v336
    %1481 = vmatpush.msra.mxu0 %v332
    %1482 = vmatmul.f32.gmra.mxu0 %v1460
    %v1483 = vpop.f32.mrf.mxu0
    %v1484 = vadd.f32 0.0, %v1483
    %1485 = vdwg.mxu0
    %1486 = vmatpush.msra.mxu0 %v393
    %1487 = vmatpush.msra.mxu0 %v389
    %1488 = vmatpush.msra.mxu0 %v385
    %1489 = vmatpush.msra.mxu0 %v381
    %1490 = vmatpush.msra.mxu0 %v377
    %1491 = vmatpush.msra.mxu0 %v373
    %1492 = vmatpush.msra.mxu0 %v369
    %1493 = vmatpush.msra.mxu0 %v365
    %1494 = vmatpush.msra.mxu0 %v361
    %1495 = vmatpush.msra.mxu0 %v357
    %1496 = vmatpush.msra.mxu0 %v353
    %1497 = vmatpush.msra.mxu0 %v349
    %1498 = vmatpush.msra.mxu0 %v345
    %1499 = vmatpush.msra.mxu0 %v341
    %1500 = vmatpush.msra.mxu0 %v337
    %1501 = vmatpush.msra.mxu0 %v333
    %1502 = vmatmul.f32.gmra.mxu0 %v1460
    %v1503 = vpop.f32.mrf.mxu0
    %v1504 = vadd.f32 0.0, %v1503
    %1505 = vdwg.mxu0
    %1506 = vmatpush.msra.mxu0 %v394
    %1507 = vmatpush.msra.mxu0 %v390
    %1508 = vmatpush.msra.mxu0 %v386
    %1509 = vmatpush.msra.mxu0 %v382
    %1510 = vmatpush.msra.mxu0 %v378
    %1511 = vmatpush.msra.mxu0 %v374
    %1512 = vmatpush.msra.mxu0 %v370
    %1513 = vmatpush.msra.mxu0 %v366
    %1514 = vmatpush.msra.mxu0 %v362
    %1515 = vmatpush.msra.mxu0 %v358
    %1516 = vmatpush.msra.mxu0 %v354
    %1517 = vmatpush.msra.mxu0 %v350
    %1518 = vmatpush.msra.mxu0 %v346
    %1519 = vmatpush.msra.mxu0 %v342
    %1520 = vmatpush.msra.mxu0 %v338
    %1521 = vmatpush.msra.mxu0 %v334
    %1522 = vmatmul.f32.gmra.mxu0 %v1460
    %v1523 = vpop.f32.mrf.mxu0
    %v1524 = vadd.f32 0.0, %v1523
    %1525 = vdwg.mxu0
    %1526 = vmatpush.msra.mxu0 %v395
    %1527 = vmatpush.msra.mxu0 %v391
    %1528 = vmatpush.msra.mxu0 %v387
    %1529 = vmatpush.msra.mxu0 %v383
    %1530 = vmatpush.msra.mxu0 %v379
    %1531 = vmatpush.msra.mxu0 %v375
    %1532 = vmatpush.msra.mxu0 %v371
    %1533 = vmatpush.msra.mxu0 %v367
    %1534 = vmatpush.msra.mxu0 %v363
    %1535 = vmatpush.msra.mxu0 %v359
    %1536 = vmatpush.msra.mxu0 %v355
    %1537 = vmatpush.msra.mxu0 %v351
    %1538 = vmatpush.msra.mxu0 %v347
    %1539 = vmatpush.msra.mxu0 %v343
    %1540 = vmatpush.msra.mxu0 %v339
    %1541 = vmatpush.msra.mxu0 %v335
    %1542 = vmatmul.f32.gmra.mxu0 %v1460
    %v1543 = vpop.f32.mrf.mxu0
    %v1544 = vadd.f32 0.0, %v1543
    %1545 = vdwg.mxu0
    %v1546 = vadd.f32 %v1462, %v1484
    %v1547 = vadd.f32 %v1463, %v1504
    %v1548 = vadd.f32 %v1464, %v1524
    %v1549 = vadd.f32 %v1465, %v1544
    %v1550 = vxor.u32 %v1546, 2147483648
    %v1551 = vmul.f32 %v1550, 1.442695
    %v1552 = vpow.pop %v1551
    %v1553 = vadd.f32 %v1552, 1.0
    %v1554 = vrcp.pop %v1553
    %v1555 = vmul.f32 %v1553, %v1554
    %v1556 = vsub.f32 1.0, %v1555
    %v1557 = vmul.f32 %v1554, %v1556
    %v1558 = vadd.f32 %v1554, %v1557
    %vm1559 = vweird.f32 %v1553
    %vm1560 = vweird.f32 %v1554
    %vm1561 = vmor %vm1559, %vm1560
    %v1562 = vsel %vm1561, %v1554, %v1558
    %v1563 = vand.u32 2147483647, %v1553
    %vm1564 = vcmp.eq.f32.partialorder %v1563, 8.507059e+37
    %v1565 = vand.u32 %v1553, 2147483648
    %v1566 = vor.u32 1.1754944e-38, %v1565
    %v1567 = vsel %vm1564, %v1566, %v1562
    %v1568 = vmul.f32 1.0, %v1567
    %v1569 = vxor.u32 %v1547, 2147483648
    %v1570 = vmul.f32 %v1569, 1.442695
    %v1571 = vpow.pop %v1570
    %v1572 = vadd.f32 %v1571, 1.0
    %v1573 = vrcp.pop %v1572
    %v1574 = vmul.f32 %v1572, %v1573
    %v1575 = vsub.f32 1.0, %v1574
    %v1576 = vmul.f32 %v1573, %v1575
    %v1577 = vadd.f32 %v1573, %v1576
    %vm1578 = vweird.f32 %v1572
    %vm1579 = vweird.f32 %v1573
    %vm1580 = vmor %vm1578, %vm1579
    %v1581 = vsel %vm1580, %v1573, %v1577
    %v1582 = vand.u32 2147483647, %v1572
    %vm1583 = vcmp.eq.f32.partialorder %v1582, 8.507059e+37
    %v1584 = vand.u32 %v1572, 2147483648
    %v1585 = vor.u32 1.1754944e-38, %v1584
    %v1586 = vsel %vm1583, %v1585, %v1581
    %v1587 = vmul.f32 1.0, %v1586
    %v1588 = vtanh.pop %v1548
    %v1589 = vxor.u32 %v1549, 2147483648
    %v1590 = vmul.f32 %v1589, 1.442695
    %v1591 = vpow.pop %v1590
    %v1592 = vadd.f32 %v1591, 1.0
    %v1593 = vrcp.pop %v1592
    %v1594 = vmul.f32 %v1592, %v1593
    %v1595 = vsub.f32 1.0, %v1594
    %v1596 = vmul.f32 %v1593, %v1595
    %v1597 = vadd.f32 %v1593, %v1596
    %vm1598 = vweird.f32 %v1592
    %vm1599 = vweird.f32 %v1593
    %vm1600 = vmor %vm1598, %vm1599
    %v1601 = vsel %vm1600, %v1593, %v1597
    %v1602 = vand.u32 2147483647, %v1592
    %vm1603 = vcmp.eq.f32.partialorder %v1602, 8.507059e+37
    %v1604 = vand.u32 %v1592, 2147483648
    %v1605 = vor.u32 1.1754944e-38, %v1604
    %v1606 = vsel %vm1603, %v1605, %v1601
    %v1607 = vmul.f32 1.0, %v1606
    %v1608 = vmul.f32 %v1587, %v1458
    %v1609 = vmul.f32 %v1568, %v1588
    %v1610 = vadd.f32 %v1608, %v1609
    %v1611 = vtanh.pop %v1610
    %v1612 = vmul.f32 %v1607, %v1611
    %1613 = vst [vmem:[#allocation3] sm:$0xff] %v1612
    %1614 = vst [vmem:[#allocation4] sm:$0xff] %v1610
    // Predicated region
    $region38: #{tpu_custom_call.1} parent=1 // pred_check
      %p1615 = pneg %p79
    $region39: #{tpu_custom_call.1} parent=1 // pred_check_branch
      %1617 = sbr.rel (%p1615) target = $region41
    $region40: #{tpu_custom_call.1} parent=1 // pred_region
      %v1618 = vld [vmem:[#allocation3] sm:$0xff]
      %1619 = vst [vmem:[#allocation13] sm:$0xff] %v1618
    $region41: #{tpu_custom_call.1} parent=1 // pred_fallthru
      _
    // Predicated region
    $region42: #{tpu_custom_call.1} parent=1 // pred_check
      _
    $region43: #{tpu_custom_call.1} parent=1 // pred_check_branch
      %1621 = sbr.rel (0) target = $region45
    $region44: #{tpu_custom_call.1} parent=1 // pred_region
      %1623 = vsyncadd [#allocation7], 0
      %s1625 = sshll.u32 [#allocation13], 4
      %s1626 = int_to_ptr.vmem [resolvable:$true] %s1625
      %s1627 = sshll.u32 %s4, 4
      %s1628 = int_to_ptr.hbm [resolvable:$true] %s1627
      %1630 = dma.vmem_to_hbm [thread:$0]  %s1626, 128, %s1628, [#allocation7]
    $region45: #{tpu_custom_call.1} parent=1 // pred_fallthru
      _
    // Predicated region
    $region46: #{tpu_custom_call.1} parent=1 // pred_check
      _
    $region47: #{tpu_custom_call.1} parent=1 // pred_check_branch
      %1632 = sbr.rel (0) target = $region49
    $region48: #{tpu_custom_call.1} parent=1 // pred_region
      %1634 = dma.done [#allocation7], 128
    $region49: #{tpu_custom_call.1} parent=1 // pred_fallthru
      _
    %1635 = vsyncpa [#allocation6], 1
    %1636 = vsyncpa [#allocation9], 1
    %1637 = vsyncpa [#allocation12], 1
    %1638 = vsyncpa [#allocation7], 1

</llo_original>
